<compile_context>
chip_gen: v5e
topology: v5e:2x2
jax: 0.10.0
libtpu: 0.0.40
codegen_flags: <defaults>
</compile_context>

<pallas_src>
import math

import jax
import jax.numpy as jnp
import numpy as np
from jax.experimental import pallas as pl
from jax.experimental.pallas import tpu as pltpu

# ----------------------------- configuration --------------------------------
B = 2            # batch
S = 8            # sequence length
H = 32           # hidden_dim
NUM_HEADS = 4
HEAD_DIM = H // NUM_HEADS
FFN = 4 * H
SCALE = HEAD_DIM ** -0.5
LN_EPS = 1e-5
R = B * S        # rows processed in the single grid step
LANES = 128      # lane-dense slab width

# --------------------- parameter-slab row layout (one DMA) ------------------
WQ_R = 0                      # (H, H)  scale folded in
WK_R = WQ_R + H               # (H, H)
WV_R = WK_R + H               # (H, H)
WO_R = WV_R + H               # (H, H)
W1_R = WO_R + H               # (H, FFN)
W2_R = W1_R + H               # (FFN, H)
VEC_R = W2_R + FFN            # vector rows start here (288)
(LN1W, LN1B, LN2W, LN2B, BQ, BK, BV, BO, B1, B2) = range(10)
MSK = 10                      # NUM_HEADS rows of 0/1 per-head feature masks
N_VEC = MSK + NUM_HEADS
P_ROWS = ((VEC_R + N_VEC + 7) // 8) * 8   # 304 (sublane-aligned)

# erf (Abramowitz & Stegun 7.1.26), max abs error 1.5e-7
_A1, _A2, _A3, _A4, _A5 = 0.254829592, -0.284496736, 1.421413741, -1.453152027, 1.061405429
_EP = 0.3275911
_INV_SQRT2 = 0.7071067811865476


# ------------------------------- kernel -------------------------------------
def _layernorm(x, w, b):
    mu = jnp.mean(x, axis=-1, keepdims=True)
    var = jnp.mean((x - mu) ** 2, axis=-1, keepdims=True)
    return (x - mu) * jax.lax.rsqrt(var + LN_EPS) * w + b


def _erf(x):
    a = jnp.abs(x)
    t = 1.0 / (1.0 + _EP * a)
    poly = t * (_A1 + t * (_A2 + t * (_A3 + t * (_A4 + t * _A5))))
    e = 1.0 - poly * jnp.exp(-(a * a))
    return jnp.where(x < 0, -e, e)


def _gelu_exact(x):
    return 0.5 * x * (1.0 + _erf(x * _INV_SQRT2))


def self_attn_block_kernel(x_ref, p_ref, out_ref):
    x = x_ref[...]                                              # (R, H) f32

    def vrow(i, width=H):                                       # (1, width) slab vector row
        r = VEC_R + i
        return p_ref[r:r + 1, 0:width]

    # --- norm1 + Q/K/V projections (scale pre-folded into wq/bq) ---
    hn = _layernorm(x, vrow(LN1W), vrow(LN1B))
    q = jnp.dot(hn, p_ref[WQ_R:WQ_R + H, 0:H], preferred_element_type=jnp.float32) + vrow(BQ)
    k = jnp.dot(hn, p_ref[WK_R:WK_R + H, 0:H], preferred_element_type=jnp.float32) + vrow(BK)
    v = jnp.dot(hn, p_ref[WV_R:WV_R + H, 0:H], preferred_element_type=jnp.float32) + vrow(BV)
    k3 = k.reshape(B, S, H)                                     # leading-dim split: free

    # --- per-head attention via 0/1 feature masks (no lane slices / concats / transposes) ---
    ctx = None
    for hd in range(NUM_HEADS):
        m = p_ref[VEC_R + MSK + hd:VEC_R + MSK + hd + 1, 0:H]   # (1, H) 0/1 head mask
        q_h = (q * m).reshape(B, S, H)
        v_h = (v * m).reshape(B, S, H)
        s_h = jnp.einsum('bqd,bkd->bqk', q_h, k3,
                         preferred_element_type=jnp.float32)    # (B, S, S)
        s_h = s_h - jnp.max(s_h, axis=-1, keepdims=True)
        e_h = jnp.exp(s_h)
        p_h = e_h / jnp.sum(e_h, axis=-1, keepdims=True)        # exact divide (parity)
        c_h = jnp.einsum('bqk,bkd->bqd', p_h, v_h,
                         preferred_element_type=jnp.float32).reshape(R, H)
        ctx = c_h if ctx is None else ctx + c_h                 # masked heads own disjoint lanes
    # ctx == concat(head outputs) in the original lane order -> single fused out-projection
    attn = jnp.dot(ctx, p_ref[WO_R:WO_R + H, 0:H],
                   preferred_element_type=jnp.float32) + vrow(BO)
    x1 = x + attn                                               # residual 1

    # --- norm2 + FFN (Linear -> exact-erf GELU -> Linear) ---
    hn2 = _layernorm(x1, vrow(LN2W), vrow(LN2B))
    f = jnp.dot(hn2, p_ref[W1_R:W1_R + H, 0:FFN],
                preferred_element_type=jnp.float32) + vrow(B1, FFN)
    f = _gelu_exact(f)   # switch to tanh-approx GELU only if strict PyTorch erf parity is not needed
    f = jnp.dot(f, p_ref[W2_R:W2_R + FFN, 0:H],
                preferred_element_type=jnp.float32) + vrow(B2)

    out_ref[...] = x1 + f                                       # residual 2
    # TODO(synk): dropout is identity (inference); optional attention mask / return_attention
    #             path not implemented.


# ------------------------------- wrapper -------------------------------------
def pack_params(p):
    """Pack all weights/biases/LN params + per-head masks into one (P_ROWS, 128) slab."""
    slab = jnp.zeros((P_ROWS, LANES), jnp.float32)
    slab = slab.at[WQ_R:WQ_R + H, 0:H].set(p["wq"] * SCALE)
    slab = slab.at[WK_R:WK_R + H, 0:H].set(p["wk"])
    slab = slab.at[WV_R:WV_R + H, 0:H].set(p["wv"])
    slab = slab.at[WO_R:WO_R + H, 0:H].set(p["wo"])
    slab = slab.at[W1_R:W1_R + H, 0:FFN].set(p["w1"])
    slab = slab.at[W2_R:W2_R + FFN, 0:H].set(p["w2"])
    slab = slab.at[VEC_R + LN1W, 0:H].set(p["ln1_w"])
    slab = slab.at[VEC_R + LN1B, 0:H].set(p["ln1_b"])
    slab = slab.at[VEC_R + LN2W, 0:H].set(p["ln2_w"])
    slab = slab.at[VEC_R + LN2B, 0:H].set(p["ln2_b"])
    slab = slab.at[VEC_R + BQ, 0:H].set(p["bq"] * SCALE)
    slab = slab.at[VEC_R + BK, 0:H].set(p["bk"])
    slab = slab.at[VEC_R + BV, 0:H].set(p["bv"])
    slab = slab.at[VEC_R + BO, 0:H].set(p["bo"])
    slab = slab.at[VEC_R + B1, 0:FFN].set(p["b1"])
    slab = slab.at[VEC_R + B2, 0:H].set(p["b2"])
    head_id = np.arange(H) // HEAD_DIM
    for hd in range(NUM_HEADS):
        slab = slab.at[VEC_R + MSK + hd, 0:H].set(
            jnp.asarray((head_id == hd).astype(np.float32)))
    return slab


def self_attention_block(x, slab):
    """x: (B, S, H) float32; slab: packed (P_ROWS, 128) parameter slab."""
    x2d = x.reshape(R, H)   # flatten batch*seq rows (free in XLA)
    out2d = pl.pallas_call(
        self_attn_block_kernel,
        out_shape=jax.ShapeDtypeStruct((R, H), jnp.float32),
        grid=(1,),   # single step; kernel is launch/DMA-latency bound at this size
        in_specs=[
            pl.BlockSpec((R, H), lambda i: (0, 0)),
            pl.BlockSpec((P_ROWS, LANES), lambda i: (0, 0)),
        ],
        out_specs=pl.BlockSpec((R, H), lambda i: (0, 0)),
        compiler_params=pltpu.CompilerParams(dimension_semantics=("arbitrary",)),
    )(x2d, slab)
    return out2d.reshape(B, S, H)


# ----------------------------- reference (pure JAX) --------------------------
def reference(x, p):
    prec = jax.lax.Precision.HIGHEST

    def ln(v, w, b):
        mu = jnp.mean(v, -1, keepdims=True)
        var = jnp.mean((v - mu) ** 2, -1, keepdims=True)
        return (v - mu) * jax.lax.rsqrt(var + LN_EPS) * w + b

    h = ln(x, p["ln1_w"], p["ln1_b"])
    q = jnp.einsum("bsi,io->bso", h, p["wq"], precision=prec) + p["bq"]
    k = jnp.einsum("bsi,io->bso", h, p["wk"], precision=prec) + p["bk"]
    v = jnp.einsum("bsi,io->bso", h, p["wv"], precision=prec) + p["bv"]
    q = q.reshape(B, S, NUM_HEADS, HEAD_DIM).transpose(0, 2, 1, 3)
    k = k.reshape(B, S, NUM_HEADS, HEAD_DIM).transpose(0, 2, 1, 3)
    v = v.reshape(B, S, NUM_HEADS, HEAD_DIM).transpose(0, 2, 1, 3)
    s = jnp.einsum("bhqd,bhkd->bhqk", q, k, precision=prec) * SCALE
    a = jax.nn.softmax(s, axis=-1)
    o = jnp.einsum("bhqk,bhkd->bhqd", a, v, precision=prec)
    o = o.transpose(0, 2, 1, 3).reshape(B, S, H)
    o = jnp.einsum("bsi,io->bso", o, p["wo"], precision=prec) + p["bo"]
    x1 = x + o
    h2 = ln(x1, p["ln2_w"], p["ln2_b"])
    f = jnp.einsum("bsi,io->bso", h2, p["w1"], precision=prec) + p["b1"]
    f = jax.nn.gelu(f, approximate=False)
    f = jnp.einsum("bsi,io->bso", f, p["w2"], precision=prec) + p["b2"]
    return x1 + f


# --------------------------------- main --------------------------------------
if __name__ == "__main__":
    key = jax.random.PRNGKey(0)
    keys = jax.random.split(key, 12)

    def lin_init(k, fan_in, fan_out):
        # PyTorch Linear default init (uniform +-1/sqrt(fan_in)); stored as (in, out)
        bound = 1.0 / math.sqrt(fan_in)
        kw, kb = jax.random.split(k)
        w = jax.random.uniform(kw, (fan_in, fan_out), jnp.float32, -bound, bound)
        b = jax.random.uniform(kb, (fan_out,), jnp.float32, -bound, bound)
        return w, b

    params = {}
    params["wq"], params["bq"] = lin_init(keys[0], H, H)
    params["wk"], params["bk"] = lin_init(keys[1], H, H)
    params["wv"], params["bv"] = lin_init(keys[2], H, H)
    params["wo"], params["bo"] = lin_init(keys[3], H, H)
    params["w1"], params["b1"] = lin_init(keys[4], H, FFN)
    params["w2"], params["b2"] = lin_init(keys[5], FFN, H)
    params["ln1_w"] = jnp.ones((H,), jnp.float32)
    params["ln1_b"] = jnp.zeros((H,), jnp.float32)
    params["ln2_w"] = jnp.ones((H,), jnp.float32)
    params["ln2_b"] = jnp.zeros((H,), jnp.float32)

    x = jax.random.normal(keys[6], (B, S, H), jnp.float32)

    slab = pack_params(params)
    out = jax.block_until_ready(self_attention_block(x, slab))

    ref = jax.block_until_ready(reference(x, params))
    np.testing.assert_allclose(np.asarray(out), np.asarray(ref), atol=2e-3, rtol=2e-3)

    print("KERNEL_OK")
</pallas_src>

<mosaic_0001>
module attributes {stable_mosaic.version = 11 : i64} {
  func.func @self_attn_block_kernel(%arg0: i32, %arg1: memref<16x32xf32, #tpu.memory_space<vmem>>, %arg2: memref<304x128xf32, #tpu.memory_space<vmem>>, %arg3: memref<16x32xf32, #tpu.memory_space<vmem>>) attributes {dimension_semantics = [#tpu.dimension_semantics<arbitrary>], iteration_bounds = array<i64: 1>, scalar_prefetch = 0 : i64, scratch_operands = 0 : i64, tpu.core_type = #tpu.core_type<tc>, window_params = [{pipeline_mode = #tpu.pipeline_mode<synchronous>, transform_indices = @transform_0, window_bounds = array<i64: 16, 32>}, {pipeline_mode = #tpu.pipeline_mode<synchronous>, transform_indices = @transform_1, window_bounds = array<i64: 304, 128>}, {pipeline_mode = #tpu.pipeline_mode<synchronous>, transform_indices = @transform_2, window_bounds = array<i64: 16, 32>}]} {
    %c0 = arith.constant 0 : index
    %c0_0 = arith.constant 0 : index
    %0 = vector.load %arg1[%c0, %c0_0] : memref<16x32xf32, #tpu.memory_space<vmem>>, vector<16x32xf32>
    %c288 = arith.constant 288 : index
    %c0_1 = arith.constant 0 : index
    %1 = vector.load %arg2[%c288, %c0_1] : memref<304x128xf32, #tpu.memory_space<vmem>>, vector<1x32xf32>
    %c289 = arith.constant 289 : index
    %c0_2 = arith.constant 0 : index
    %2 = vector.load %arg2[%c289, %c0_2] : memref<304x128xf32, #tpu.memory_space<vmem>>, vector<1x32xf32>
    %cst = arith.constant dense<0.000000e+00> : vector<16xf32>
    %3 = vector.multi_reduction <add>, %0, %cst [1] : vector<16x32xf32> to vector<16xf32>
    %4 = vector.shape_cast %3 : vector<16xf32> to vector<16x1xf32>
    %cst_3 = arith.constant 3.200000e+01 : f32
    %5 = vector.broadcast %cst_3 : f32 to vector<16x1xf32>
    %6 = arith.divf %4, %5 : vector<16x1xf32>
    %7 = vector.broadcast %6 : vector<16x1xf32> to vector<16x32xf32>
    %8 = arith.subf %0, %7 : vector<16x32xf32>
    %9 = arith.mulf %8, %8 : vector<16x32xf32>
    %cst_4 = arith.constant dense<0.000000e+00> : vector<16xf32>
    %10 = vector.multi_reduction <add>, %9, %cst_4 [1] : vector<16x32xf32> to vector<16xf32>
    %11 = vector.shape_cast %10 : vector<16xf32> to vector<16x1xf32>
    %cst_5 = arith.constant 3.200000e+01 : f32
    %12 = vector.broadcast %cst_5 : f32 to vector<16x1xf32>
    %13 = arith.divf %11, %12 : vector<16x1xf32>
    %14 = vector.broadcast %6 : vector<16x1xf32> to vector<16x32xf32>
    %15 = arith.subf %0, %14 : vector<16x32xf32>
    %cst_6 = arith.constant 9.99999974E-6 : f32
    %16 = vector.broadcast %cst_6 : f32 to vector<16x1xf32>
    %17 = arith.addf %13, %16 : vector<16x1xf32>
    %18 = math.rsqrt %17 : vector<16x1xf32>
    %19 = vector.broadcast %18 : vector<16x1xf32> to vector<16x32xf32>
    %20 = arith.mulf %15, %19 : vector<16x32xf32>
    %21 = vector.broadcast %1 : vector<1x32xf32> to vector<16x32xf32>
    %22 = arith.mulf %20, %21 : vector<16x32xf32>
    %23 = vector.broadcast %2 : vector<1x32xf32> to vector<16x32xf32>
    %24 = arith.addf %22, %23 : vector<16x32xf32>
    %c0_7 = arith.constant 0 : index
    %c0_8 = arith.constant 0 : index
    %25 = vector.load %arg2[%c0_7, %c0_8] : memref<304x128xf32, #tpu.memory_space<vmem>>, vector<32x32xf32>
    %cst_9 = arith.constant dense<0.000000e+00> : vector<16x32xf32>
    %26 = tpu.matmul %24, %25, %cst_9 {dimension_numbers = #tpu.dot_dimension_numbers<[1], [0], [0], [1], [0, 0, 1, 1], [], []>} : vector<16x32xf32>, vector<32x32xf32>, vector<16x32xf32> -> vector<16x32xf32>
    %c292 = arith.constant 292 : index
    %c0_10 = arith.constant 0 : index
    %27 = vector.load %arg2[%c292, %c0_10] : memref<304x128xf32, #tpu.memory_space<vmem>>, vector<1x32xf32>
    %28 = vector.broadcast %27 : vector<1x32xf32> to vector<16x32xf32>
    %29 = arith.addf %26, %28 : vector<16x32xf32>
    %c32 = arith.constant 32 : index
    %c0_11 = arith.constant 0 : index
    %30 = vector.load %arg2[%c32, %c0_11] : memref<304x128xf32, #tpu.memory_space<vmem>>, vector<32x32xf32>
    %cst_12 = arith.constant dense<0.000000e+00> : vector<16x32xf32>
    %31 = tpu.matmul %24, %30, %cst_12 {dimension_numbers = #tpu.dot_dimension_numbers<[1], [0], [0], [1], [0, 0, 1, 1], [], []>} : vector<16x32xf32>, vector<32x32xf32>, vector<16x32xf32> -> vector<16x32xf32>
    %c293 = arith.constant 293 : index
    %c0_13 = arith.constant 0 : index
    %32 = vector.load %arg2[%c293, %c0_13] : memref<304x128xf32, #tpu.memory_space<vmem>>, vector<1x32xf32>
    %33 = vector.broadcast %32 : vector<1x32xf32> to vector<16x32xf32>
    %34 = arith.addf %31, %33 : vector<16x32xf32>
    %c64 = arith.constant 64 : index
    %c0_14 = arith.constant 0 : index
    %35 = vector.load %arg2[%c64, %c0_14] : memref<304x128xf32, #tpu.memory_space<vmem>>, vector<32x32xf32>
    %cst_15 = arith.constant dense<0.000000e+00> : vector<16x32xf32>
    %36 = tpu.matmul %24, %35, %cst_15 {dimension_numbers = #tpu.dot_dimension_numbers<[1], [0], [0], [1], [0, 0, 1, 1], [], []>} : vector<16x32xf32>, vector<32x32xf32>, vector<16x32xf32> -> vector<16x32xf32>
    %c294 = arith.constant 294 : index
    %c0_16 = arith.constant 0 : index
    %37 = vector.load %arg2[%c294, %c0_16] : memref<304x128xf32, #tpu.memory_space<vmem>>, vector<1x32xf32>
    %38 = vector.broadcast %37 : vector<1x32xf32> to vector<16x32xf32>
    %39 = arith.addf %36, %38 : vector<16x32xf32>
    %40 = vector.shape_cast %34 : vector<16x32xf32> to vector<2x8x32xf32>
    %c298 = arith.constant 298 : index
    %c0_17 = arith.constant 0 : index
    %41 = vector.load %arg2[%c298, %c0_17] : memref<304x128xf32, #tpu.memory_space<vmem>>, vector<1x32xf32>
    %42 = vector.broadcast %41 : vector<1x32xf32> to vector<16x32xf32>
    %43 = arith.mulf %29, %42 : vector<16x32xf32>
    %44 = vector.shape_cast %43 : vector<16x32xf32> to vector<2x8x32xf32>
    %45 = vector.broadcast %41 : vector<1x32xf32> to vector<16x32xf32>
    %46 = arith.mulf %39, %45 : vector<16x32xf32>
    %47 = vector.shape_cast %46 : vector<16x32xf32> to vector<2x8x32xf32>
    "tpu.trace_start"() <{level = 10 : i32, message = "bqd,bkd->bqk"}> : () -> ()
    %cst_18 = arith.constant dense<0.000000e+00> : vector<2x8x8xf32>
    %48 = tpu.matmul %44, %40, %cst_18 {dimension_numbers = #tpu.dot_dimension_numbers<[2], [2], [1], [1], [0, 0, 0, 1, 1, 1], [0], [0]>} : vector<2x8x32xf32>, vector<2x8x32xf32>, vector<2x8x8xf32> -> vector<2x8x8xf32>
    "tpu.trace_stop"() : () -> ()
    %cst_19 = arith.constant dense<0xFF800000> : vector<2x8xf32>
    %49 = vector.multi_reduction <maximumf>, %48, %cst_19 [2] : vector<2x8x8xf32> to vector<2x8xf32>
    %50 = vector.shape_cast %49 : vector<2x8xf32> to vector<2x8x1xf32>
    %51 = vector.broadcast %50 : vector<2x8x1xf32> to vector<2x8x8xf32>
    %52 = arith.subf %48, %51 : vector<2x8x8xf32>
    %53 = math.exp %52 : vector<2x8x8xf32>
    %cst_20 = arith.constant dense<0.000000e+00> : vector<2x8xf32>
    %54 = vector.multi_reduction <add>, %53, %cst_20 [2] : vector<2x8x8xf32> to vector<2x8xf32>
    %55 = vector.shape_cast %54 : vector<2x8xf32> to vector<2x8x1xf32>
    %56 = vector.broadcast %55 : vector<2x8x1xf32> to vector<2x8x8xf32>
    %57 = arith.divf %53, %56 : vector<2x8x8xf32>
    "tpu.trace_start"() <{level = 10 : i32, message = "bqk,bkd->bqd"}> : () -> ()
    %cst_21 = arith.constant dense<0.000000e+00> : vector<2x8x32xf32>
    %58 = tpu.matmul %57, %47, %cst_21 {dimension_numbers = #tpu.dot_dimension_numbers<[2], [1], [1], [2], [0, 0, 0, 1, 1, 2], [0], [0]>} : vector<2x8x8xf32>, vector<2x8x32xf32>, vector<2x8x32xf32> -> vector<2x8x32xf32>
    "tpu.trace_stop"() : () -> ()
    %59 = vector.shape_cast %58 : vector<2x8x32xf32> to vector<16x32xf32>
    %c299 = arith.constant 299 : index
    %c0_22 = arith.constant 0 : index
    %60 = vector.load %arg2[%c299, %c0_22] : memref<304x128xf32, #tpu.memory_space<vmem>>, vector<1x32xf32>
    %61 = vector.broadcast %60 : vector<1x32xf32> to vector<16x32xf32>
    %62 = arith.mulf %29, %61 : vector<16x32xf32>
    %63 = vector.shape_cast %62 : vector<16x32xf32> to vector<2x8x32xf32>
    %64 = vector.broadcast %60 : vector<1x32xf32> to vector<16x32xf32>
    %65 = arith.mulf %39, %64 : vector<16x32xf32>
    %66 = vector.shape_cast %65 : vector<16x32xf32> to vector<2x8x32xf32>
    "tpu.trace_start"() <{level = 10 : i32, message = "bqd,bkd->bqk"}> : () -> ()
    %cst_23 = arith.constant dense<0.000000e+00> : vector<2x8x8xf32>
    %67 = tpu.matmul %63, %40, %cst_23 {dimension_numbers = #tpu.dot_dimension_numbers<[2], [2], [1], [1], [0, 0, 0, 1, 1, 1], [0], [0]>} : vector<2x8x32xf32>, vector<2x8x32xf32>, vector<2x8x8xf32> -> vector<2x8x8xf32>
    "tpu.trace_stop"() : () -> ()
    %cst_24 = arith.constant dense<0xFF800000> : vector<2x8xf32>
    %68 = vector.multi_reduction <maximumf>, %67, %cst_24 [2] : vector<2x8x8xf32> to vector<2x8xf32>
    %69 = vector.shape_cast %68 : vector<2x8xf32> to vector<2x8x1xf32>
    %70 = vector.broadcast %69 : vector<2x8x1xf32> to vector<2x8x8xf32>
    %71 = arith.subf %67, %70 : vector<2x8x8xf32>
    %72 = math.exp %71 : vector<2x8x8xf32>
    %cst_25 = arith.constant dense<0.000000e+00> : vector<2x8xf32>
    %73 = vector.multi_reduction <add>, %72, %cst_25 [2] : vector<2x8x8xf32> to vector<2x8xf32>
    %74 = vector.shape_cast %73 : vector<2x8xf32> to vector<2x8x1xf32>
    %75 = vector.broadcast %74 : vector<2x8x1xf32> to vector<2x8x8xf32>
    %76 = arith.divf %72, %75 : vector<2x8x8xf32>
    "tpu.trace_start"() <{level = 10 : i32, message = "bqk,bkd->bqd"}> : () -> ()
    %cst_26 = arith.constant dense<0.000000e+00> : vector<2x8x32xf32>
    %77 = tpu.matmul %76, %66, %cst_26 {dimension_numbers = #tpu.dot_dimension_numbers<[2], [1], [1], [2], [0, 0, 0, 1, 1, 2], [0], [0]>} : vector<2x8x8xf32>, vector<2x8x32xf32>, vector<2x8x32xf32> -> vector<2x8x32xf32>
    "tpu.trace_stop"() : () -> ()
    %78 = vector.shape_cast %77 : vector<2x8x32xf32> to vector<16x32xf32>
    %79 = arith.addf %59, %78 : vector<16x32xf32>
    %c300 = arith.constant 300 : index
    %c0_27 = arith.constant 0 : index
    %80 = vector.load %arg2[%c300, %c0_27] : memref<304x128xf32, #tpu.memory_space<vmem>>, vector<1x32xf32>
    %81 = vector.broadcast %80 : vector<1x32xf32> to vector<16x32xf32>
    %82 = arith.mulf %29, %81 : vector<16x32xf32>
    %83 = vector.shape_cast %82 : vector<16x32xf32> to vector<2x8x32xf32>
    %84 = vector.broadcast %80 : vector<1x32xf32> to vector<16x32xf32>
    %85 = arith.mulf %39, %84 : vector<16x32xf32>
    %86 = vector.shape_cast %85 : vector<16x32xf32> to vector<2x8x32xf32>
    "tpu.trace_start"() <{level = 10 : i32, message = "bqd,bkd->bqk"}> : () -> ()
    %cst_28 = arith.constant dense<0.000000e+00> : vector<2x8x8xf32>
    %87 = tpu.matmul %83, %40, %cst_28 {dimension_numbers = #tpu.dot_dimension_numbers<[2], [2], [1], [1], [0, 0, 0, 1, 1, 1], [0], [0]>} : vector<2x8x32xf32>, vector<2x8x32xf32>, vector<2x8x8xf32> -> vector<2x8x8xf32>
    "tpu.trace_stop"() : () -> ()
    %cst_29 = arith.constant dense<0xFF800000> : vector<2x8xf32>
    %88 = vector.multi_reduction <maximumf>, %87, %cst_29 [2] : vector<2x8x8xf32> to vector<2x8xf32>
    %89 = vector.shape_cast %88 : vector<2x8xf32> to vector<2x8x1xf32>
    %90 = vector.broadcast %89 : vector<2x8x1xf32> to vector<2x8x8xf32>
    %91 = arith.subf %87, %90 : vector<2x8x8xf32>
    %92 = math.exp %91 : vector<2x8x8xf32>
    %cst_30 = arith.constant dense<0.000000e+00> : vector<2x8xf32>
    %93 = vector.multi_reduction <add>, %92, %cst_30 [2] : vector<2x8x8xf32> to vector<2x8xf32>
    %94 = vector.shape_cast %93 : vector<2x8xf32> to vector<2x8x1xf32>
    %95 = vector.broadcast %94 : vector<2x8x1xf32> to vector<2x8x8xf32>
    %96 = arith.divf %92, %95 : vector<2x8x8xf32>
    "tpu.trace_start"() <{level = 10 : i32, message = "bqk,bkd->bqd"}> : () -> ()
    %cst_31 = arith.constant dense<0.000000e+00> : vector<2x8x32xf32>
    %97 = tpu.matmul %96, %86, %cst_31 {dimension_numbers = #tpu.dot_dimension_numbers<[2], [1], [1], [2], [0, 0, 0, 1, 1, 2], [0], [0]>} : vector<2x8x8xf32>, vector<2x8x32xf32>, vector<2x8x32xf32> -> vector<2x8x32xf32>
    "tpu.trace_stop"() : () -> ()
    %98 = vector.shape_cast %97 : vector<2x8x32xf32> to vector<16x32xf32>
    %99 = arith.addf %79, %98 : vector<16x32xf32>
    %c301 = arith.constant 301 : index
    %c0_32 = arith.constant 0 : index
    %100 = vector.load %arg2[%c301, %c0_32] : memref<304x128xf32, #tpu.memory_space<vmem>>, vector<1x32xf32>
    %101 = vector.broadcast %100 : vector<1x32xf32> to vector<16x32xf32>
    %102 = arith.mulf %29, %101 : vector<16x32xf32>
    %103 = vector.shape_cast %102 : vector<16x32xf32> to vector<2x8x32xf32>
    %104 = vector.broadcast %100 : vector<1x32xf32> to vector<16x32xf32>
    %105 = arith.mulf %39, %104 : vector<16x32xf32>
    %106 = vector.shape_cast %105 : vector<16x32xf32> to vector<2x8x32xf32>
    "tpu.trace_start"() <{level = 10 : i32, message = "bqd,bkd->bqk"}> : () -> ()
    %cst_33 = arith.constant dense<0.000000e+00> : vector<2x8x8xf32>
    %107 = tpu.matmul %103, %40, %cst_33 {dimension_numbers = #tpu.dot_dimension_numbers<[2], [2], [1], [1], [0, 0, 0, 1, 1, 1], [0], [0]>} : vector<2x8x32xf32>, vector<2x8x32xf32>, vector<2x8x8xf32> -> vector<2x8x8xf32>
    "tpu.trace_stop"() : () -> ()
    %cst_34 = arith.constant dense<0xFF800000> : vector<2x8xf32>
    %108 = vector.multi_reduction <maximumf>, %107, %cst_34 [2] : vector<2x8x8xf32> to vector<2x8xf32>
    %109 = vector.shape_cast %108 : vector<2x8xf32> to vector<2x8x1xf32>
    %110 = vector.broadcast %109 : vector<2x8x1xf32> to vector<2x8x8xf32>
    %111 = arith.subf %107, %110 : vector<2x8x8xf32>
    %112 = math.exp %111 : vector<2x8x8xf32>
    %cst_35 = arith.constant dense<0.000000e+00> : vector<2x8xf32>
    %113 = vector.multi_reduction <add>, %112, %cst_35 [2] : vector<2x8x8xf32> to vector<2x8xf32>
    %114 = vector.shape_cast %113 : vector<2x8xf32> to vector<2x8x1xf32>
    %115 = vector.broadcast %114 : vector<2x8x1xf32> to vector<2x8x8xf32>
    %116 = arith.divf %112, %115 : vector<2x8x8xf32>
    "tpu.trace_start"() <{level = 10 : i32, message = "bqk,bkd->bqd"}> : () -> ()
    %cst_36 = arith.constant dense<0.000000e+00> : vector<2x8x32xf32>
    %117 = tpu.matmul %116, %106, %cst_36 {dimension_numbers = #tpu.dot_dimension_numbers<[2], [1], [1], [2], [0, 0, 0, 1, 1, 2], [0], [0]>} : vector<2x8x8xf32>, vector<2x8x32xf32>, vector<2x8x32xf32> -> vector<2x8x32xf32>
    "tpu.trace_stop"() : () -> ()
    %118 = vector.shape_cast %117 : vector<2x8x32xf32> to vector<16x32xf32>
    %119 = arith.addf %99, %118 : vector<16x32xf32>
    %c96 = arith.constant 96 : index
    %c0_37 = arith.constant 0 : index
    %120 = vector.load %arg2[%c96, %c0_37] : memref<304x128xf32, #tpu.memory_space<vmem>>, vector<32x32xf32>
    %cst_38 = arith.constant dense<0.000000e+00> : vector<16x32xf32>
    %121 = tpu.matmul %119, %120, %cst_38 {dimension_numbers = #tpu.dot_dimension_numbers<[1], [0], [0], [1], [0, 0, 1, 1], [], []>} : vector<16x32xf32>, vector<32x32xf32>, vector<16x32xf32> -> vector<16x32xf32>
    %c295 = arith.constant 295 : index
    %c0_39 = arith.constant 0 : index
    %122 = vector.load %arg2[%c295, %c0_39] : memref<304x128xf32, #tpu.memory_space<vmem>>, vector<1x32xf32>
    %123 = vector.broadcast %122 : vector<1x32xf32> to vector<16x32xf32>
    %124 = arith.addf %121, %123 : vector<16x32xf32>
    %125 = arith.addf %0, %124 : vector<16x32xf32>
    %c290 = arith.constant 290 : index
    %c0_40 = arith.constant 0 : index
    %126 = vector.load %arg2[%c290, %c0_40] : memref<304x128xf32, #tpu.memory_space<vmem>>, vector<1x32xf32>
    %c291 = arith.constant 291 : index
    %c0_41 = arith.constant 0 : index
    %127 = vector.load %arg2[%c291, %c0_41] : memref<304x128xf32, #tpu.memory_space<vmem>>, vector<1x32xf32>
    %cst_42 = arith.constant dense<0.000000e+00> : vector<16xf32>
    %128 = vector.multi_reduction <add>, %125, %cst_42 [1] : vector<16x32xf32> to vector<16xf32>
    %129 = vector.shape_cast %128 : vector<16xf32> to vector<16x1xf32>
    %cst_43 = arith.constant 3.200000e+01 : f32
    %130 = vector.broadcast %cst_43 : f32 to vector<16x1xf32>
    %131 = arith.divf %129, %130 : vector<16x1xf32>
    %132 = vector.broadcast %131 : vector<16x1xf32> to vector<16x32xf32>
    %133 = arith.subf %125, %132 : vector<16x32xf32>
    %134 = arith.mulf %133, %133 : vector<16x32xf32>
    %cst_44 = arith.constant dense<0.000000e+00> : vector<16xf32>
    %135 = vector.multi_reduction <add>, %134, %cst_44 [1] : vector<16x32xf32> to vector<16xf32>
    %136 = vector.shape_cast %135 : vector<16xf32> to vector<16x1xf32>
    %cst_45 = arith.constant 3.200000e+01 : f32
    %137 = vector.broadcast %cst_45 : f32 to vector<16x1xf32>
    %138 = arith.divf %136, %137 : vector<16x1xf32>
    %139 = vector.broadcast %131 : vector<16x1xf32> to vector<16x32xf32>
    %140 = arith.subf %125, %139 : vector<16x32xf32>
    %cst_46 = arith.constant 9.99999974E-6 : f32
    %141 = vector.broadcast %cst_46 : f32 to vector<16x1xf32>
    %142 = arith.addf %138, %141 : vector<16x1xf32>
    %143 = math.rsqrt %142 : vector<16x1xf32>
    %144 = vector.broadcast %143 : vector<16x1xf32> to vector<16x32xf32>
    %145 = arith.mulf %140, %144 : vector<16x32xf32>
    %146 = vector.broadcast %126 : vector<1x32xf32> to vector<16x32xf32>
    %147 = arith.mulf %145, %146 : vector<16x32xf32>
    %148 = vector.broadcast %127 : vector<1x32xf32> to vector<16x32xf32>
    %149 = arith.addf %147, %148 : vector<16x32xf32>
    %c128 = arith.constant 128 : index
    %c0_47 = arith.constant 0 : index
    %150 = vector.load %arg2[%c128, %c0_47] : memref<304x128xf32, #tpu.memory_space<vmem>>, vector<32x128xf32>
    %cst_48 = arith.constant dense<0.000000e+00> : vector<16x128xf32>
    %151 = tpu.matmul %149, %150, %cst_48 {dimension_numbers = #tpu.dot_dimension_numbers<[1], [0], [0], [1], [0, 0, 1, 1], [], []>} : vector<16x32xf32>, vector<32x128xf32>, vector<16x128xf32> -> vector<16x128xf32>
    %c296 = arith.constant 296 : index
    %c0_49 = arith.constant 0 : index
    %152 = vector.load %arg2[%c296, %c0_49] : memref<304x128xf32, #tpu.memory_space<vmem>>, vector<1x128xf32>
    %153 = vector.broadcast %152 : vector<1x128xf32> to vector<16x128xf32>
    %154 = arith.addf %151, %153 : vector<16x128xf32>
    %cst_50 = arith.constant 5.000000e-01 : f32
    %155 = vector.broadcast %cst_50 : f32 to vector<16x128xf32>
    %156 = arith.mulf %155, %154 : vector<16x128xf32>
    %cst_51 = arith.constant 0.707106769 : f32
    %157 = vector.broadcast %cst_51 : f32 to vector<16x128xf32>
    %158 = arith.mulf %154, %157 : vector<16x128xf32>
    %159 = math.absf %158 : vector<16x128xf32>
    %cst_52 = arith.constant 0.327591091 : f32
    %160 = vector.broadcast %cst_52 : f32 to vector<16x128xf32>
    %161 = arith.mulf %160, %159 : vector<16x128xf32>
    %cst_53 = arith.constant 1.000000e+00 : f32
    %162 = vector.broadcast %cst_53 : f32 to vector<16x128xf32>
    %163 = arith.addf %162, %161 : vector<16x128xf32>
    %cst_54 = arith.constant 1.000000e+00 : f32
    %164 = vector.broadcast %cst_54 : f32 to vector<16x128xf32>
    %165 = arith.divf %164, %163 : vector<16x128xf32>
    %cst_55 = arith.constant 1.06140542 : f32
    %166 = vector.broadcast %cst_55 : f32 to vector<16x128xf32>
    %167 = arith.mulf %165, %166 : vector<16x128xf32>
    %cst_56 = arith.constant -1.45315206 : f32
    %168 = vector.broadcast %cst_56 : f32 to vector<16x128xf32>
    %169 = arith.addf %168, %167 : vector<16x128xf32>
    %170 = arith.mulf %165, %169 : vector<16x128xf32>
    %cst_57 = arith.constant 1.42141378 : f32
    %171 = vector.broadcast %cst_57 : f32 to vector<16x128xf32>
    %172 = arith.addf %171, %170 : vector<16x128xf32>
    %173 = arith.mulf %165, %172 : vector<16x128xf32>
    %cst_58 = arith.constant -0.284496725 : f32
    %174 = vector.broadcast %cst_58 : f32 to vector<16x128xf32>
    %175 = arith.addf %174, %173 : vector<16x128xf32>
    %176 = arith.mulf %165, %175 : vector<16x128xf32>
    %cst_59 = arith.constant 0.254829586 : f32
    %177 = vector.broadcast %cst_59 : f32 to vector<16x128xf32>
    %178 = arith.addf %177, %176 : vector<16x128xf32>
    %179 = arith.mulf %165, %178 : vector<16x128xf32>
    %180 = arith.mulf %159, %159 : vector<16x128xf32>
    %cst_60 = arith.constant 0.000000e+00 : f32
    %181 = vector.broadcast %cst_60 : f32 to vector<16x128xf32>
    %182 = arith.subf %181, %180 : vector<16x128xf32>
    %183 = math.exp %182 : vector<16x128xf32>
    %184 = arith.mulf %179, %183 : vector<16x128xf32>
    %cst_61 = arith.constant 1.000000e+00 : f32
    %185 = vector.broadcast %cst_61 : f32 to vector<16x128xf32>
    %186 = arith.subf %185, %184 : vector<16x128xf32>
    %cst_62 = arith.constant 0.000000e+00 : f32
    %187 = vector.broadcast %cst_62 : f32 to vector<16x128xf32>
    %188 = arith.cmpf olt, %158, %187 : vector<16x128xf32>
    %cst_63 = arith.constant 0.000000e+00 : f32
    %189 = vector.broadcast %cst_63 : f32 to vector<16x128xf32>
    %190 = arith.subf %189, %186 : vector<16x128xf32>
    %191 = arith.select %188, %190, %186 : vector<16x128xi1>, vector<16x128xf32>
    %cst_64 = arith.constant 1.000000e+00 : f32
    %192 = vector.broadcast %cst_64 : f32 to vector<16x128xf32>
    %193 = arith.addf %192, %191 : vector<16x128xf32>
    %194 = arith.mulf %156, %193 : vector<16x128xf32>
    %c160 = arith.constant 160 : index
    %c0_65 = arith.constant 0 : index
    %195 = vector.load %arg2[%c160, %c0_65] : memref<304x128xf32, #tpu.memory_space<vmem>>, vector<128x32xf32>
    %cst_66 = arith.constant dense<0.000000e+00> : vector<16x32xf32>
    %196 = tpu.matmul %194, %195, %cst_66 {dimension_numbers = #tpu.dot_dimension_numbers<[1], [0], [0], [1], [0, 0, 1, 1], [], []>} : vector<16x128xf32>, vector<128x32xf32>, vector<16x32xf32> -> vector<16x32xf32>
    %c297 = arith.constant 297 : index
    %c0_67 = arith.constant 0 : index
    %197 = vector.load %arg2[%c297, %c0_67] : memref<304x128xf32, #tpu.memory_space<vmem>>, vector<1x32xf32>
    %198 = vector.broadcast %197 : vector<1x32xf32> to vector<16x32xf32>
    %199 = arith.addf %196, %198 : vector<16x32xf32>
    %200 = arith.addf %125, %199 : vector<16x32xf32>
    %c0_68 = arith.constant 0 : index
    %c0_69 = arith.constant 0 : index
    %201 = vector.load %arg3[%c0_68, %c0_69] : memref<16x32xf32, #tpu.memory_space<vmem>>, vector<16x32xf32>
    tpu.vector_store %arg3[%c0_68, %c0_69], %200 {strides = array<i32>} : memref<16x32xf32, #tpu.memory_space<vmem>>, vector<16x32xf32>,
    return
  }
  func.func @transform_0(%arg0: i32) -> (i32, i32) {
    %c0_i32 = arith.constant 0 : i32
    %c0_i32_0 = arith.constant 0 : i32
    %c0_i32_1 = arith.constant 0 : i32
    return %c0_i32, %c0_i32_0 : i32, i32
  }
  func.func @transform_1(%arg0: i32) -> (i32, i32) {
    %c0_i32 = arith.constant 0 : i32
    %c0_i32_0 = arith.constant 0 : i32
    %c0_i32_1 = arith.constant 0 : i32
    return %c0_i32, %c0_i32_0 : i32, i32
  }
  func.func @transform_2(%arg0: i32) -> (i32, i32) {
    %c0_i32 = arith.constant 0 : i32
    %c0_i32_0 = arith.constant 0 : i32
    %c0_i32_1 = arith.constant 0 : i32
    return %c0_i32, %c0_i32_0 : i32, i32
  }
}

</mosaic_0001>

<llo_original>
// kernel: tpu_custom_call.1
$region0: #{tpu_custom_call.1}
  #allocation0 [shape = 'u32[]', space=smem, size = 0x4, offset = 0x4, fixed_abs, tag = 'smem constant byte address 0x4 - core index']
  #allocation1 [shape = 'u32[72,128]{1,0:T(1,128)}', space=vmem, size = 0x9000, scoped, tag = 'internal scratch']
  %s0 = inlined_call_operand.hbm [shape: f32[16,32], index: 0, kind: input, shape index: {}]
  %s1 = inlined_call_operand.hbm [shape: f32[304,128], index: 1, kind: input, shape index: {}]
  %s2 = inlined_call_operand.hbm [shape: f32[16,32], index: 2, kind: output, shape index: {}]
  %s3 = sld [smem:[#allocation0]]
  $region26: #{tpu_custom_call.1} parent=0
    _
  %s5 = ssub.s32 1, %s3
  %s6 = scalar_select 0, %s5, %s3
  $region1: #{tpu_custom_call.1} parent=0
    #allocation2 [shape = 'u8[8192]{0}', space=vmem, size = 0x2000, scoped, tag = 'input window, operand 0, single buffered']
    #allocation3 [shape = 's32[1]{0}', space=sflag, size = 0x4, scoped, tag = 'scoped memory for tpu_custom_call.1']
    #allocation4 [shape = 's32[1]{0}', space=sflag, size = 0x4, scoped, tag = 'scoped memory for tpu_custom_call.1']
    #allocation5 [shape = 'u8[155648]{0}', space=vmem, size = 0x26000, scoped, tag = 'input window, operand 1, single buffered']
    #allocation6 [shape = 's32[1]{0}', space=sflag, size = 0x4, scoped, tag = 'scoped memory for tpu_custom_call.1']
    #allocation7 [shape = 'u8[8192]{0}', space=vmem, size = 0x2000, scoped, tag = 'output window, operand 0, single buffered']
    %7 = vsyncpa [#allocation3], 0
    %8 = vsyncpa [#allocation6], 0
    %9 = vsyncpa [#allocation4], 0
    // Predicated region
    $region2: #{tpu_custom_call.1} parent=1 // pred_check
      _
    $region3: #{tpu_custom_call.1} parent=1 // pred_check_branch
      %11 = sbr.rel (0) target = $region5
    $region4: #{tpu_custom_call.1} parent=1 // pred_region
      %13 = vsyncadd [#allocation3], 0
      %s14 = sshll.u32 %s0, 4
      %s15 = int_to_ptr.hbm [resolvable:$true] %s14
      %s16 = sshll.u32 [#allocation2], 4
      %s17 = int_to_ptr.vmem [resolvable:$true] %s16
      %22 = dma.hbm_to_vmem [thread:$0]  %s15, 256, %s17, [#allocation3], 128, 128, 8
    $region5: #{tpu_custom_call.1} parent=1 // pred_fallthru
      _
    // Predicated region
    $region6: #{tpu_custom_call.1} parent=1 // pred_check
      _
    $region7: #{tpu_custom_call.1} parent=1 // pred_check_branch
      %24 = sbr.rel (0) target = $region9
    $region8: #{tpu_custom_call.1} parent=1 // pred_region
      %26 = vsyncadd [#allocation6], 0
      %s27 = sshll.u32 %s1, 4
      %s28 = int_to_ptr.hbm [resolvable:$true] %s27
      %s29 = sshll.u32 [#allocation5], 4
      %s30 = int_to_ptr.vmem [resolvable:$true] %s29
      %35 = dma.hbm_to_vmem [thread:$0]  %s28, 4864, %s30, [#allocation6], 128, 128, 8
    $region9: #{tpu_custom_call.1} parent=1 // pred_fallthru
      _
    // Predicated region
    $region10: #{tpu_custom_call.1} parent=1 // pred_check
      _
    $region11: #{tpu_custom_call.1} parent=1 // pred_check_branch
      %37 = sbr.rel (0) target = $region13
    $region12: #{tpu_custom_call.1} parent=1 // pred_region
      %39 = dma.done [#allocation3], 256
    $region13: #{tpu_custom_call.1} parent=1 // pred_fallthru
      _
    // Predicated region
    $region14: #{tpu_custom_call.1} parent=1 // pred_check
      _
    $region15: #{tpu_custom_call.1} parent=1 // pred_check_branch
      %41 = sbr.rel (0) target = $region17
    $region16: #{tpu_custom_call.1} parent=1 // pred_region
      %43 = dma.done [#allocation6], 4864
    $region17: #{tpu_custom_call.1} parent=1 // pred_fallthru
      _
    %v44 = vld [vmem:[#allocation2] sm:$0xff]
    %v45 = vld [vmem:[#allocation2 + $0x8] sm:$0xff]
    %v46 = vld [vmem:[#allocation5 + $0x120] sm:$0x1]
    %v47 = vld [vmem:[#allocation5 + $0x121] sm:$0x1]
    %vm48 = vcmask 261120
    %v49 = vsel %vm48, %v44, 0.0
    %50 = vadd.xlane.f32.xlu0 %v49
    %v51 = vpop.xlane.xlu0 %50
    %v52 = vsel %vm48, %v45, 0.0
    %53 = vadd.xlane.f32.xlu0 %v52
    %v54 = vpop.xlane.xlu0 %53
    %v55 = vrcp.pop 32.0
    %v56 = vmul.f32 32.0, %v55
    %v57 = vsub.f32 1.0, %v56
    %v58 = vmul.f32 %v55, %v57
    %v59 = vadd.f32 %v55, %v58
    %vm60 = vweird.f32 %v55
    %v61 = vsel %vm60, %v55, %v59
    %v62 = vmul.f32 %v51, %v61
    %v63 = vmul.f32 %v54, %v61
    %v64 = vsub.f32 %v44, %v62
    %v65 = vsub.f32 %v45, %v63
    %v66 = vmul.f32 %v64, %v64
    %v67 = vmul.f32 %v65, %v65
    %v68 = vsel %vm48, %v66, 0.0
    %69 = vadd.xlane.f32.xlu0 %v68
    %v70 = vpop.xlane.xlu0 %69
    %v71 = vsel %vm48, %v67, 0.0
    %72 = vadd.xlane.f32.xlu0 %v71
    %v73 = vpop.xlane.xlu0 %72
    %v74 = vmul.f32 %v70, %v61
    %v75 = vmul.f32 %v73, %v61
    %v76 = vadd.f32 %v74, 1e-05
    %v77 = vadd.f32 %v75, 1e-05
    %v78 = vrsqrt.pop %v76
    %v79 = vmul.f32 %v78, %v76
    %v80 = vmul.f32 %v79, %v78
    %v81 = vmul.f32 0.5, %v80
    %v82 = vsub.f32 1.5, %v81
    %v83 = vmul.f32 %v78, %v82
    %vm84 = vweird.f32 %v76
    %vm85 = vweird.f32 %v78
    %vm86 = vmor %vm84, %vm85
    %v87 = vsel %vm86, %v78, %v83
    %v88 = vrsqrt.pop %v77
    %v89 = vmul.f32 %v88, %v77
    %v90 = vmul.f32 %v89, %v88
    %v91 = vmul.f32 0.5, %v90
    %v92 = vsub.f32 1.5, %v91
    %v93 = vmul.f32 %v88, %v92
    %vm94 = vweird.f32 %v77
    %vm95 = vweird.f32 %v88
    %vm96 = vmor %vm94, %vm95
    %v97 = vsel %vm96, %v88, %v93
    %v98 = vmul.f32 %v64, %v87
    %v99 = vmul.f32 %v65, %v97
    %v100 = vperm.slane %v46, 0
    %v101 = vmul.f32 %v98, %v100
    %v102 = vmul.f32 %v99, %v100
    %v103 = vperm.slane %v47, 0
    %v104 = vadd.f32 %v101, %v103
    %v105 = vadd.f32 %v102, %v103
    %v106 = vld [vmem:[#allocation5] sm:$0xff]
    %v107 = vld [vmem:[#allocation5 + $0x8] sm:$0xff]
    %v108 = vld [vmem:[#allocation5 + $0x10] sm:$0xff]
    %v109 = vld [vmem:[#allocation5 + $0x18] sm:$0xff]
    %v110 = vld [vmem:[#allocation5 + $0x124] sm:$0x1]
    %v111 = vperm.slane %v110, 0
    %v113 = vsel %vm48, %v104, 0
    %v116 = vsel %vm48, %v105, 0
    %118 = vmatpush.msra.mxu0 0.0
    %119 = vmatpush.msra.mxu0 0.0
    %120 = vmatpush.msra.mxu0 0.0
    %121 = vmatpush.msra.mxu0 0.0
    %122 = vmatpush.msra.mxu0 0.0
    %123 = vmatpush.msra.mxu0 0.0
    %124 = vmatpush.msra.mxu0 0.0
    %125 = vmatpush.msra.mxu0 0.0
    %126 = vmatpush.msra.mxu0 0.0
    %127 = vmatpush.msra.mxu0 0.0
    %128 = vmatpush.msra.mxu0 0.0
    %129 = vmatpush.msra.mxu0 0.0
    %130 = vmatpush.msra.mxu0 %v109
    %131 = vmatpush.msra.mxu0 %v108
    %132 = vmatpush.msra.mxu0 %v107
    %133 = vmatpush.msra.mxu0 %v106
    %134 = vmatmul.f32.gmra.mxu0 %v113
    %v135 = vpop.f32.mrf.mxu0
    %v136 = vadd.f32 %v111, %v135
    %137 = vmatmul.f32.gmra.mxu0 %v116
    %v138 = vpop.f32.mrf.mxu0
    %v139 = vadd.f32 %v111, %v138
    %140 = vdwg.mxu0
    %v141 = vld [vmem:[#allocation5 + $0x20] sm:$0xff]
    %v142 = vld [vmem:[#allocation5 + $0x28] sm:$0xff]
    %v143 = vld [vmem:[#allocation5 + $0x30] sm:$0xff]
    %v144 = vld [vmem:[#allocation5 + $0x38] sm:$0xff]
    %v145 = vld [vmem:[#allocation5 + $0x125] sm:$0x1]
    %v146 = vperm.slane %v145, 0
    %147 = vmatpush.msra.mxu0 0.0
    %148 = vmatpush.msra.mxu0 0.0
    %149 = vmatpush.msra.mxu0 0.0
    %150 = vmatpush.msra.mxu0 0.0
    %151 = vmatpush.msra.mxu0 0.0
    %152 = vmatpush.msra.mxu0 0.0
    %153 = vmatpush.msra.mxu0 0.0
    %154 = vmatpush.msra.mxu0 0.0
    %155 = vmatpush.msra.mxu0 0.0
    %156 = vmatpush.msra.mxu0 0.0
    %157 = vmatpush.msra.mxu0 0.0
    %158 = vmatpush.msra.mxu0 0.0
    %159 = vmatpush.msra.mxu0 %v144
    %160 = vmatpush.msra.mxu0 %v143
    %161 = vmatpush.msra.mxu0 %v142
    %162 = vmatpush.msra.mxu0 %v141
    %163 = vmatmul.f32.gmra.mxu0 %v113
    %v164 = vpop.f32.mrf.mxu0
    %v165 = vadd.f32 %v146, %v164
    %166 = vmatmul.f32.gmra.mxu0 %v116
    %v167 = vpop.f32.mrf.mxu0
    %v168 = vadd.f32 %v146, %v167
    %169 = vdwg.mxu0
    %v170 = vld [vmem:[#allocation5 + $0x40] sm:$0xff]
    %v171 = vld [vmem:[#allocation5 + $0x48] sm:$0xff]
    %v172 = vld [vmem:[#allocation5 + $0x50] sm:$0xff]
    %v173 = vld [vmem:[#allocation5 + $0x58] sm:$0xff]
    %v174 = vld [vmem:[#allocation5 + $0x126] sm:$0x1]
    %v175 = vperm.slane %v174, 0
    %176 = vmatpush.msra.mxu0 0.0
    %177 = vmatpush.msra.mxu0 0.0
    %178 = vmatpush.msra.mxu0 0.0
    %179 = vmatpush.msra.mxu0 0.0
    %180 = vmatpush.msra.mxu0 0.0
    %181 = vmatpush.msra.mxu0 0.0
    %182 = vmatpush.msra.mxu0 0.0
    %183 = vmatpush.msra.mxu0 0.0
    %184 = vmatpush.msra.mxu0 0.0
    %185 = vmatpush.msra.mxu0 0.0
    %186 = vmatpush.msra.mxu0 0.0
    %187 = vmatpush.msra.mxu0 0.0
    %188 = vmatpush.msra.mxu0 %v173
    %189 = vmatpush.msra.mxu0 %v172
    %190 = vmatpush.msra.mxu0 %v171
    %191 = vmatpush.msra.mxu0 %v170
    %192 = vmatmul.f32.gmra.mxu0 %v113
    %v193 = vpop.f32.mrf.mxu0
    %v194 = vadd.f32 %v175, %v193
    %195 = vmatmul.f32.gmra.mxu0 %v116
    %v196 = vpop.f32.mrf.mxu0
    %v197 = vadd.f32 %v175, %v196
    %198 = vdwg.mxu0
    %v199 = vld [vmem:[#allocation5 + $0x12a] sm:$0x1]
    %v200 = vperm.slane %v199, 0
    %v201 = vmul.f32 %v136, %v200
    %v202 = vmul.f32 %v139, %v200
    %v203 = vmul.f32 %v194, %v200
    %v204 = vmul.f32 %v197, %v200
    %v206 = vsel %vm48, %v201, 0
    %v209 = vsel %vm48, %v165, 0
    %211 = vmatpush.xpose.msra.mxu0 0.0
    %212 = vmatpush.xpose.msra.mxu0 0.0
    %213 = vmatpush.xpose.msra.mxu0 0.0
    %214 = vmatpush.xpose.msra.mxu0 0.0
    %215 = vmatpush.xpose.msra.mxu0 0.0
    %216 = vmatpush.xpose.msra.mxu0 0.0
    %217 = vmatpush.xpose.msra.mxu0 0.0
    %218 = vmatpush.xpose.msra.mxu0 0.0
    %219 = vmatpush.xpose.msra.mxu0 0.0
    %220 = vmatpush.xpose.msra.mxu0 0.0
    %221 = vmatpush.xpose.msra.mxu0 0.0
    %222 = vmatpush.xpose.msra.mxu0 0.0
    %223 = vmatpush.xpose.msra.mxu0 0.0
    %224 = vmatpush.xpose.msra.mxu0 0.0
    %225 = vmatpush.xpose.msra.mxu0 0.0
    %226 = vmatpush.xpose.msra.mxu0 %v209
    %227 = vmatmul.f32.gmra.mxu0 %v206
    %v228 = vpop.f32.mrf.mxu0
    %v229 = vadd.f32 0.0, %v228
    %230 = vdwg.mxu0
    %v232 = vsel %vm48, %v202, 0
    %v235 = vsel %vm48, %v168, 0
    %237 = vmatpush.xpose.msra.mxu0 0.0
    %238 = vmatpush.xpose.msra.mxu0 0.0
    %239 = vmatpush.xpose.msra.mxu0 0.0
    %240 = vmatpush.xpose.msra.mxu0 0.0
    %241 = vmatpush.xpose.msra.mxu0 0.0
    %242 = vmatpush.xpose.msra.mxu0 0.0
    %243 = vmatpush.xpose.msra.mxu0 0.0
    %244 = vmatpush.xpose.msra.mxu0 0.0
    %245 = vmatpush.xpose.msra.mxu0 0.0
    %246 = vmatpush.xpose.msra.mxu0 0.0
    %247 = vmatpush.xpose.msra.mxu0 0.0
    %248 = vmatpush.xpose.msra.mxu0 0.0
    %249 = vmatpush.xpose.msra.mxu0 0.0
    %250 = vmatpush.xpose.msra.mxu0 0.0
    %251 = vmatpush.xpose.msra.mxu0 0.0
    %252 = vmatpush.xpose.msra.mxu0 %v235
    %253 = vmatmul.f32.gmra.mxu0 %v232
    %v254 = vpop.f32.mrf.mxu0
    %v255 = vadd.f32 0.0, %v254
    %256 = vdwg.mxu0
    %vm257 = vcmask 64512
    %v258 = vsel %vm257, %v229, -inf
    %259 = vmax.xlane.f32.xlu0 %v258
    %v260 = vpop.xlane.xlu0 %259
    %v261 = vsel %vm257, %v255, -inf
    %262 = vmax.xlane.f32.xlu0 %v261
    %v263 = vpop.xlane.xlu0 %262
    %v264 = vsub.f32 %v229, %v260
    %v265 = vsub.f32 %v255, %v263
    %v266 = vmul.f32 %v264, 1.442695
    %v267 = vpow.pop %v266
    %v268 = vmul.f32 %v265, 1.442695
    %v269 = vpow.pop %v268
    %v270 = vsel %vm257, %v267, 0.0
    %271 = vadd.xlane.f32.xlu0 %v270
    %v272 = vpop.xlane.xlu0 %271
    %v273 = vsel %vm257, %v269, 0.0
    %274 = vadd.xlane.f32.xlu0 %v273
    %v275 = vpop.xlane.xlu0 %274
    %v276 = vrcp.pop %v272
    %v277 = vmul.f32 %v272, %v276
    %v278 = vsub.f32 1.0, %v277
    %v279 = vmul.f32 %v276, %v278
    %v280 = vadd.f32 %v276, %v279
    %vm281 = vweird.f32 %v272
    %vm282 = vweird.f32 %v276
    %vm283 = vmor %vm281, %vm282
    %v284 = vsel %vm283, %v276, %v280
    %v285 = vand.u32 2147483647, %v272
    %vm286 = vcmp.eq.f32.partialorder %v285, 8.507059e+37
    %v287 = vand.u32 %v272, 2147483648
    %v288 = vor.u32 1.1754944e-38, %v287
    %v289 = vsel %vm286, %v288, %v284
    %v290 = vmul.f32 %v267, %v289
    %v291 = vrcp.pop %v275
    %v292 = vmul.f32 %v275, %v291
    %v293 = vsub.f32 1.0, %v292
    %v294 = vmul.f32 %v291, %v293
    %v295 = vadd.f32 %v291, %v294
    %vm296 = vweird.f32 %v275
    %vm297 = vweird.f32 %v291
    %vm298 = vmor %vm296, %vm297
    %v299 = vsel %vm298, %v291, %v295
    %v300 = vand.u32 2147483647, %v275
    %vm301 = vcmp.eq.f32.partialorder %v300, 8.507059e+37
    %v302 = vand.u32 %v275, 2147483648
    %v303 = vor.u32 1.1754944e-38, %v302
    %v304 = vsel %vm301, %v303, %v299
    %v305 = vmul.f32 %v269, %v304
    %v307 = vsel %vm257, %v290, 0
    %309 = vmatpush.msra.mxu0 0.0
    %310 = vmatpush.msra.mxu0 0.0
    %311 = vmatpush.msra.mxu0 0.0
    %312 = vmatpush.msra.mxu0 0.0
    %313 = vmatpush.msra.mxu0 0.0
    %314 = vmatpush.msra.mxu0 0.0
    %315 = vmatpush.msra.mxu0 0.0
    %316 = vmatpush.msra.mxu0 0.0
    %317 = vmatpush.msra.mxu0 0.0
    %318 = vmatpush.msra.mxu0 0.0
    %319 = vmatpush.msra.mxu0 0.0
    %320 = vmatpush.msra.mxu0 0.0
    %321 = vmatpush.msra.mxu0 0.0
    %322 = vmatpush.msra.mxu0 0.0
    %323 = vmatpush.msra.mxu0 0.0
    %324 = vmatpush.msra.mxu0 %v203
    %325 = vmatmul.f32.gmra.mxu0 %v307
    %v326 = vpop.f32.mrf.mxu0
    %v327 = vadd.f32 0.0, %v326
    %328 = vdwg.mxu0
    %v330 = vsel %vm257, %v305, 0
    %332 = vmatpush.msra.mxu0 0.0
    %333 = vmatpush.msra.mxu0 0.0
    %334 = vmatpush.msra.mxu0 0.0
    %335 = vmatpush.msra.mxu0 0.0
    %336 = vmatpush.msra.mxu0 0.0
    %337 = vmatpush.msra.mxu0 0.0
    %338 = vmatpush.msra.mxu0 0.0
    %339 = vmatpush.msra.mxu0 0.0
    %340 = vmatpush.msra.mxu0 0.0
    %341 = vmatpush.msra.mxu0 0.0
    %342 = vmatpush.msra.mxu0 0.0
    %343 = vmatpush.msra.mxu0 0.0
    %344 = vmatpush.msra.mxu0 0.0
    %345 = vmatpush.msra.mxu0 0.0
    %346 = vmatpush.msra.mxu0 0.0
    %347 = vmatpush.msra.mxu0 %v204
    %348 = vmatmul.f32.gmra.mxu0 %v330
    %v349 = vpop.f32.mrf.mxu0
    %v350 = vadd.f32 0.0, %v349
    %351 = vdwg.mxu0
    %v352 = vld [vmem:[#allocation5 + $0x12b] sm:$0x1]
    %v353 = vperm.slane %v352, 0
    %v354 = vmul.f32 %v136, %v353
    %v355 = vmul.f32 %v139, %v353
    %v356 = vmul.f32 %v194, %v353
    %v357 = vmul.f32 %v197, %v353
    %v359 = vsel %vm48, %v354, 0
    %361 = vmatpush.xpose.msra.mxu0 0.0
    %362 = vmatpush.xpose.msra.mxu0 0.0
    %363 = vmatpush.xpose.msra.mxu0 0.0
    %364 = vmatpush.xpose.msra.mxu0 0.0
    %365 = vmatpush.xpose.msra.mxu0 0.0
    %366 = vmatpush.xpose.msra.mxu0 0.0
    %367 = vmatpush.xpose.msra.mxu0 0.0
    %368 = vmatpush.xpose.msra.mxu0 0.0
    %369 = vmatpush.xpose.msra.mxu0 0.0
    %370 = vmatpush.xpose.msra.mxu0 0.0
    %371 = vmatpush.xpose.msra.mxu0 0.0
    %372 = vmatpush.xpose.msra.mxu0 0.0
    %373 = vmatpush.xpose.msra.mxu0 0.0
    %374 = vmatpush.xpose.msra.mxu0 0.0
    %375 = vmatpush.xpose.msra.mxu0 0.0
    %376 = vmatpush.xpose.msra.mxu0 %v209
    %377 = vmatmul.f32.gmra.mxu0 %v359
    %v378 = vpop.f32.mrf.mxu0
    %v379 = vadd.f32 0.0, %v378
    %380 = vdwg.mxu0
    %v382 = vsel %vm48, %v355, 0
    %384 = vmatpush.xpose.msra.mxu0 0.0
    %385 = vmatpush.xpose.msra.mxu0 0.0
    %386 = vmatpush.xpose.msra.mxu0 0.0
    %387 = vmatpush.xpose.msra.mxu0 0.0
    %388 = vmatpush.xpose.msra.mxu0 0.0
    %389 = vmatpush.xpose.msra.mxu0 0.0
    %390 = vmatpush.xpose.msra.mxu0 0.0
    %391 = vmatpush.xpose.msra.mxu0 0.0
    %392 = vmatpush.xpose.msra.mxu0 0.0
    %393 = vmatpush.xpose.msra.mxu0 0.0
    %394 = vmatpush.xpose.msra.mxu0 0.0
    %395 = vmatpush.xpose.msra.mxu0 0.0
    %396 = vmatpush.xpose.msra.mxu0 0.0
    %397 = vmatpush.xpose.msra.mxu0 0.0
    %398 = vmatpush.xpose.msra.mxu0 0.0
    %399 = vmatpush.xpose.msra.mxu0 %v235
    %400 = vmatmul.f32.gmra.mxu0 %v382
    %v401 = vpop.f32.mrf.mxu0
    %v402 = vadd.f32 0.0, %v401
    %403 = vdwg.mxu0
    %v404 = vsel %vm257, %v379, -inf
    %405 = vmax.xlane.f32.xlu0 %v404
    %v406 = vpop.xlane.xlu0 %405
    %v407 = vsel %vm257, %v402, -inf
    %408 = vmax.xlane.f32.xlu0 %v407
    %v409 = vpop.xlane.xlu0 %408
    %v410 = vsub.f32 %v379, %v406
    %v411 = vsub.f32 %v402, %v409
    %v412 = vmul.f32 %v410, 1.442695
    %v413 = vpow.pop %v412
    %v414 = vmul.f32 %v411, 1.442695
    %v415 = vpow.pop %v414
    %v416 = vsel %vm257, %v413, 0.0
    %417 = vadd.xlane.f32.xlu0 %v416
    %v418 = vpop.xlane.xlu0 %417
    %v419 = vsel %vm257, %v415, 0.0
    %420 = vadd.xlane.f32.xlu0 %v419
    %v421 = vpop.xlane.xlu0 %420
    %v422 = vrcp.pop %v418
    %v423 = vmul.f32 %v418, %v422
    %v424 = vsub.f32 1.0, %v423
    %v425 = vmul.f32 %v422, %v424
    %v426 = vadd.f32 %v422, %v425
    %vm427 = vweird.f32 %v418
    %vm428 = vweird.f32 %v422
    %vm429 = vmor %vm427, %vm428
    %v430 = vsel %vm429, %v422, %v426
    %v431 = vand.u32 2147483647, %v418
    %vm432 = vcmp.eq.f32.partialorder %v431, 8.507059e+37
    %v433 = vand.u32 %v418, 2147483648
    %v434 = vor.u32 1.1754944e-38, %v433
    %v435 = vsel %vm432, %v434, %v430
    %v436 = vmul.f32 %v413, %v435
    %v437 = vrcp.pop %v421
    %v438 = vmul.f32 %v421, %v437
    %v439 = vsub.f32 1.0, %v438
    %v440 = vmul.f32 %v437, %v439
    %v441 = vadd.f32 %v437, %v440
    %vm442 = vweird.f32 %v421
    %vm443 = vweird.f32 %v437
    %vm444 = vmor %vm442, %vm443
    %v445 = vsel %vm444, %v437, %v441
    %v446 = vand.u32 2147483647, %v421
    %vm447 = vcmp.eq.f32.partialorder %v446, 8.507059e+37
    %v448 = vand.u32 %v421, 2147483648
    %v449 = vor.u32 1.1754944e-38, %v448
    %v450 = vsel %vm447, %v449, %v445
    %v451 = vmul.f32 %v415, %v450
    %v453 = vsel %vm257, %v436, 0
    %455 = vmatpush.msra.mxu0 0.0
    %456 = vmatpush.msra.mxu0 0.0
    %457 = vmatpush.msra.mxu0 0.0
    %458 = vmatpush.msra.mxu0 0.0
    %459 = vmatpush.msra.mxu0 0.0
    %460 = vmatpush.msra.mxu0 0.0
    %461 = vmatpush.msra.mxu0 0.0
    %462 = vmatpush.msra.mxu0 0.0
    %463 = vmatpush.msra.mxu0 0.0
    %464 = vmatpush.msra.mxu0 0.0
    %465 = vmatpush.msra.mxu0 0.0
    %466 = vmatpush.msra.mxu0 0.0
    %467 = vmatpush.msra.mxu0 0.0
    %468 = vmatpush.msra.mxu0 0.0
    %469 = vmatpush.msra.mxu0 0.0
    %470 = vmatpush.msra.mxu0 %v356
    %471 = vmatmul.f32.gmra.mxu0 %v453
    %v472 = vpop.f32.mrf.mxu0
    %v473 = vadd.f32 0.0, %v472
    %474 = vdwg.mxu0
    %v476 = vsel %vm257, %v451, 0
    %478 = vmatpush.msra.mxu0 0.0
    %479 = vmatpush.msra.mxu0 0.0
    %480 = vmatpush.msra.mxu0 0.0
    %481 = vmatpush.msra.mxu0 0.0
    %482 = vmatpush.msra.mxu0 0.0
    %483 = vmatpush.msra.mxu0 0.0
    %484 = vmatpush.msra.mxu0 0.0
    %485 = vmatpush.msra.mxu0 0.0
    %486 = vmatpush.msra.mxu0 0.0
    %487 = vmatpush.msra.mxu0 0.0
    %488 = vmatpush.msra.mxu0 0.0
    %489 = vmatpush.msra.mxu0 0.0
    %490 = vmatpush.msra.mxu0 0.0
    %491 = vmatpush.msra.mxu0 0.0
    %492 = vmatpush.msra.mxu0 0.0
    %493 = vmatpush.msra.mxu0 %v357
    %494 = vmatmul.f32.gmra.mxu0 %v476
    %v495 = vpop.f32.mrf.mxu0
    %v496 = vadd.f32 0.0, %v495
    %497 = vdwg.mxu0
    %v498 = vadd.f32 %v327, %v473
    %v499 = vadd.f32 %v350, %v496
    %v500 = vld [vmem:[#allocation5 + $0x12c] sm:$0x1]
    %v501 = vperm.slane %v500, 0
    %v502 = vmul.f32 %v136, %v501
    %v503 = vmul.f32 %v139, %v501
    %v504 = vmul.f32 %v194, %v501
    %v505 = vmul.f32 %v197, %v501
    %v507 = vsel %vm48, %v502, 0
    %509 = vmatpush.xpose.msra.mxu0 0.0
    %510 = vmatpush.xpose.msra.mxu0 0.0
    %511 = vmatpush.xpose.msra.mxu0 0.0
    %512 = vmatpush.xpose.msra.mxu0 0.0
    %513 = vmatpush.xpose.msra.mxu0 0.0
    %514 = vmatpush.xpose.msra.mxu0 0.0
    %515 = vmatpush.xpose.msra.mxu0 0.0
    %516 = vmatpush.xpose.msra.mxu0 0.0
    %517 = vmatpush.xpose.msra.mxu0 0.0
    %518 = vmatpush.xpose.msra.mxu0 0.0
    %519 = vmatpush.xpose.msra.mxu0 0.0
    %520 = vmatpush.xpose.msra.mxu0 0.0
    %521 = vmatpush.xpose.msra.mxu0 0.0
    %522 = vmatpush.xpose.msra.mxu0 0.0
    %523 = vmatpush.xpose.msra.mxu0 0.0
    %524 = vmatpush.xpose.msra.mxu0 %v209
    %525 = vmatmul.f32.gmra.mxu0 %v507
    %v526 = vpop.f32.mrf.mxu0
    %v527 = vadd.f32 0.0, %v526
    %528 = vdwg.mxu0
    %v530 = vsel %vm48, %v503, 0
    %532 = vmatpush.xpose.msra.mxu0 0.0
    %533 = vmatpush.xpose.msra.mxu0 0.0
    %534 = vmatpush.xpose.msra.mxu0 0.0
    %535 = vmatpush.xpose.msra.mxu0 0.0
    %536 = vmatpush.xpose.msra.mxu0 0.0
    %537 = vmatpush.xpose.msra.mxu0 0.0
    %538 = vmatpush.xpose.msra.mxu0 0.0
    %539 = vmatpush.xpose.msra.mxu0 0.0
    %540 = vmatpush.xpose.msra.mxu0 0.0
    %541 = vmatpush.xpose.msra.mxu0 0.0
    %542 = vmatpush.xpose.msra.mxu0 0.0
    %543 = vmatpush.xpose.msra.mxu0 0.0
    %544 = vmatpush.xpose.msra.mxu0 0.0
    %545 = vmatpush.xpose.msra.mxu0 0.0
    %546 = vmatpush.xpose.msra.mxu0 0.0
    %547 = vmatpush.xpose.msra.mxu0 %v235
    %548 = vmatmul.f32.gmra.mxu0 %v530
    %v549 = vpop.f32.mrf.mxu0
    %v550 = vadd.f32 0.0, %v549
    %551 = vdwg.mxu0
    %v552 = vsel %vm257, %v527, -inf
    %553 = vmax.xlane.f32.xlu0 %v552
    %v554 = vpop.xlane.xlu0 %553
    %v555 = vsel %vm257, %v550, -inf
    %556 = vmax.xlane.f32.xlu0 %v555
    %v557 = vpop.xlane.xlu0 %556
    %v558 = vsub.f32 %v527, %v554
    %v559 = vsub.f32 %v550, %v557
    %v560 = vmul.f32 %v558, 1.442695
    %v561 = vpow.pop %v560
    %v562 = vmul.f32 %v559, 1.442695
    %v563 = vpow.pop %v562
    %v564 = vsel %vm257, %v561, 0.0
    %565 = vadd.xlane.f32.xlu0 %v564
    %v566 = vpop.xlane.xlu0 %565
    %v567 = vsel %vm257, %v563, 0.0
    %568 = vadd.xlane.f32.xlu0 %v567
    %v569 = vpop.xlane.xlu0 %568
    %v570 = vrcp.pop %v566
    %v571 = vmul.f32 %v566, %v570
    %v572 = vsub.f32 1.0, %v571
    %v573 = vmul.f32 %v570, %v572
    %v574 = vadd.f32 %v570, %v573
    %vm575 = vweird.f32 %v566
    %vm576 = vweird.f32 %v570
    %vm577 = vmor %vm575, %vm576
    %v578 = vsel %vm577, %v570, %v574
    %v579 = vand.u32 2147483647, %v566
    %vm580 = vcmp.eq.f32.partialorder %v579, 8.507059e+37
    %v581 = vand.u32 %v566, 2147483648
    %v582 = vor.u32 1.1754944e-38, %v581
    %v583 = vsel %vm580, %v582, %v578
    %v584 = vmul.f32 %v561, %v583
    %v585 = vrcp.pop %v569
    %v586 = vmul.f32 %v569, %v585
    %v587 = vsub.f32 1.0, %v586
    %v588 = vmul.f32 %v585, %v587
    %v589 = vadd.f32 %v585, %v588
    %vm590 = vweird.f32 %v569
    %vm591 = vweird.f32 %v585
    %vm592 = vmor %vm590, %vm591
    %v593 = vsel %vm592, %v585, %v589
    %v594 = vand.u32 2147483647, %v569
    %vm595 = vcmp.eq.f32.partialorder %v594, 8.507059e+37
    %v596 = vand.u32 %v569, 2147483648
    %v597 = vor.u32 1.1754944e-38, %v596
    %v598 = vsel %vm595, %v597, %v593
    %v599 = vmul.f32 %v563, %v598
    %v601 = vsel %vm257, %v584, 0
    %603 = vmatpush.msra.mxu0 0.0
    %604 = vmatpush.msra.mxu0 0.0
    %605 = vmatpush.msra.mxu0 0.0
    %606 = vmatpush.msra.mxu0 0.0
    %607 = vmatpush.msra.mxu0 0.0
    %608 = vmatpush.msra.mxu0 0.0
    %609 = vmatpush.msra.mxu0 0.0
    %610 = vmatpush.msra.mxu0 0.0
    %611 = vmatpush.msra.mxu0 0.0
    %612 = vmatpush.msra.mxu0 0.0
    %613 = vmatpush.msra.mxu0 0.0
    %614 = vmatpush.msra.mxu0 0.0
    %615 = vmatpush.msra.mxu0 0.0
    %616 = vmatpush.msra.mxu0 0.0
    %617 = vmatpush.msra.mxu0 0.0
    %618 = vmatpush.msra.mxu0 %v504
    %619 = vmatmul.f32.gmra.mxu0 %v601
    %v620 = vpop.f32.mrf.mxu0
    %v621 = vadd.f32 0.0, %v620
    %622 = vdwg.mxu0
    %v624 = vsel %vm257, %v599, 0
    %626 = vmatpush.msra.mxu0 0.0
    %627 = vmatpush.msra.mxu0 0.0
    %628 = vmatpush.msra.mxu0 0.0
    %629 = vmatpush.msra.mxu0 0.0
    %630 = vmatpush.msra.mxu0 0.0
    %631 = vmatpush.msra.mxu0 0.0
    %632 = vmatpush.msra.mxu0 0.0
    %633 = vmatpush.msra.mxu0 0.0
    %634 = vmatpush.msra.mxu0 0.0
    %635 = vmatpush.msra.mxu0 0.0
    %636 = vmatpush.msra.mxu0 0.0
    %637 = vmatpush.msra.mxu0 0.0
    %638 = vmatpush.msra.mxu0 0.0
    %639 = vmatpush.msra.mxu0 0.0
    %640 = vmatpush.msra.mxu0 0.0
    %641 = vmatpush.msra.mxu0 %v505
    %642 = vmatmul.f32.gmra.mxu0 %v624
    %v643 = vpop.f32.mrf.mxu0
    %v644 = vadd.f32 0.0, %v643
    %645 = vdwg.mxu0
    %v646 = vadd.f32 %v498, %v621
    %v647 = vadd.f32 %v499, %v644
    %v648 = vld [vmem:[#allocation5 + $0x12d] sm:$0x1]
    %v649 = vperm.slane %v648, 0
    %v650 = vmul.f32 %v136, %v649
    %v651 = vmul.f32 %v139, %v649
    %v652 = vmul.f32 %v194, %v649
    %v653 = vmul.f32 %v197, %v649
    %v655 = vsel %vm48, %v650, 0
    %657 = vmatpush.xpose.msra.mxu0 0.0
    %658 = vmatpush.xpose.msra.mxu0 0.0
    %659 = vmatpush.xpose.msra.mxu0 0.0
    %660 = vmatpush.xpose.msra.mxu0 0.0
    %661 = vmatpush.xpose.msra.mxu0 0.0
    %662 = vmatpush.xpose.msra.mxu0 0.0
    %663 = vmatpush.xpose.msra.mxu0 0.0
    %664 = vmatpush.xpose.msra.mxu0 0.0
    %665 = vmatpush.xpose.msra.mxu0 0.0
    %666 = vmatpush.xpose.msra.mxu0 0.0
    %667 = vmatpush.xpose.msra.mxu0 0.0
    %668 = vmatpush.xpose.msra.mxu0 0.0
    %669 = vmatpush.xpose.msra.mxu0 0.0
    %670 = vmatpush.xpose.msra.mxu0 0.0
    %671 = vmatpush.xpose.msra.mxu0 0.0
    %672 = vmatpush.xpose.msra.mxu0 %v209
    %673 = vmatmul.f32.gmra.mxu0 %v655
    %v674 = vpop.f32.mrf.mxu0
    %v675 = vadd.f32 0.0, %v674
    %676 = vdwg.mxu0
    %v678 = vsel %vm48, %v651, 0
    %680 = vmatpush.xpose.msra.mxu0 0.0
    %681 = vmatpush.xpose.msra.mxu0 0.0
    %682 = vmatpush.xpose.msra.mxu0 0.0
    %683 = vmatpush.xpose.msra.mxu0 0.0
    %684 = vmatpush.xpose.msra.mxu0 0.0
    %685 = vmatpush.xpose.msra.mxu0 0.0
    %686 = vmatpush.xpose.msra.mxu0 0.0
    %687 = vmatpush.xpose.msra.mxu0 0.0
    %688 = vmatpush.xpose.msra.mxu0 0.0
    %689 = vmatpush.xpose.msra.mxu0 0.0
    %690 = vmatpush.xpose.msra.mxu0 0.0
    %691 = vmatpush.xpose.msra.mxu0 0.0
    %692 = vmatpush.xpose.msra.mxu0 0.0
    %693 = vmatpush.xpose.msra.mxu0 0.0
    %694 = vmatpush.xpose.msra.mxu0 0.0
    %695 = vmatpush.xpose.msra.mxu0 %v235
    %696 = vmatmul.f32.gmra.mxu0 %v678
    %v697 = vpop.f32.mrf.mxu0
    %v698 = vadd.f32 0.0, %v697
    %699 = vdwg.mxu0
    %v700 = vsel %vm257, %v675, -inf
    %701 = vmax.xlane.f32.xlu0 %v700
    %v702 = vpop.xlane.xlu0 %701
    %v703 = vsel %vm257, %v698, -inf
    %704 = vmax.xlane.f32.xlu0 %v703
    %v705 = vpop.xlane.xlu0 %704
    %v706 = vsub.f32 %v675, %v702
    %v707 = vsub.f32 %v698, %v705
    %v708 = vmul.f32 %v706, 1.442695
    %v709 = vpow.pop %v708
    %v710 = vmul.f32 %v707, 1.442695
    %v711 = vpow.pop %v710
    %v712 = vsel %vm257, %v709, 0.0
    %713 = vadd.xlane.f32.xlu0 %v712
    %v714 = vpop.xlane.xlu0 %713
    %v715 = vsel %vm257, %v711, 0.0
    %716 = vadd.xlane.f32.xlu0 %v715
    %v717 = vpop.xlane.xlu0 %716
    %v718 = vrcp.pop %v714
    %v719 = vmul.f32 %v714, %v718
    %v720 = vsub.f32 1.0, %v719
    %v721 = vmul.f32 %v718, %v720
    %v722 = vadd.f32 %v718, %v721
    %vm723 = vweird.f32 %v714
    %vm724 = vweird.f32 %v718
    %vm725 = vmor %vm723, %vm724
    %v726 = vsel %vm725, %v718, %v722
    %v727 = vand.u32 2147483647, %v714
    %vm728 = vcmp.eq.f32.partialorder %v727, 8.507059e+37
    %v729 = vand.u32 %v714, 2147483648
    %v730 = vor.u32 1.1754944e-38, %v729
    %v731 = vsel %vm728, %v730, %v726
    %v732 = vmul.f32 %v709, %v731
    %v733 = vrcp.pop %v717
    %v734 = vmul.f32 %v717, %v733
    %v735 = vsub.f32 1.0, %v734
    %v736 = vmul.f32 %v733, %v735
    %v737 = vadd.f32 %v733, %v736
    %vm738 = vweird.f32 %v717
    %vm739 = vweird.f32 %v733
    %vm740 = vmor %vm738, %vm739
    %v741 = vsel %vm740, %v733, %v737
    %v742 = vand.u32 2147483647, %v717
    %vm743 = vcmp.eq.f32.partialorder %v742, 8.507059e+37
    %v744 = vand.u32 %v717, 2147483648
    %v745 = vor.u32 1.1754944e-38, %v744
    %v746 = vsel %vm743, %v745, %v741
    %v747 = vmul.f32 %v711, %v746
    %v749 = vsel %vm257, %v732, 0
    %751 = vmatpush.msra.mxu0 0.0
    %752 = vmatpush.msra.mxu0 0.0
    %753 = vmatpush.msra.mxu0 0.0
    %754 = vmatpush.msra.mxu0 0.0
    %755 = vmatpush.msra.mxu0 0.0
    %756 = vmatpush.msra.mxu0 0.0
    %757 = vmatpush.msra.mxu0 0.0
    %758 = vmatpush.msra.mxu0 0.0
    %759 = vmatpush.msra.mxu0 0.0
    %760 = vmatpush.msra.mxu0 0.0
    %761 = vmatpush.msra.mxu0 0.0
    %762 = vmatpush.msra.mxu0 0.0
    %763 = vmatpush.msra.mxu0 0.0
    %764 = vmatpush.msra.mxu0 0.0
    %765 = vmatpush.msra.mxu0 0.0
    %766 = vmatpush.msra.mxu0 %v652
    %767 = vmatmul.f32.gmra.mxu0 %v749
    %v768 = vpop.f32.mrf.mxu0
    %v769 = vadd.f32 0.0, %v768
    %770 = vdwg.mxu0
    %v772 = vsel %vm257, %v747, 0
    %774 = vmatpush.msra.mxu0 0.0
    %775 = vmatpush.msra.mxu0 0.0
    %776 = vmatpush.msra.mxu0 0.0
    %777 = vmatpush.msra.mxu0 0.0
    %778 = vmatpush.msra.mxu0 0.0
    %779 = vmatpush.msra.mxu0 0.0
    %780 = vmatpush.msra.mxu0 0.0
    %781 = vmatpush.msra.mxu0 0.0
    %782 = vmatpush.msra.mxu0 0.0
    %783 = vmatpush.msra.mxu0 0.0
    %784 = vmatpush.msra.mxu0 0.0
    %785 = vmatpush.msra.mxu0 0.0
    %786 = vmatpush.msra.mxu0 0.0
    %787 = vmatpush.msra.mxu0 0.0
    %788 = vmatpush.msra.mxu0 0.0
    %789 = vmatpush.msra.mxu0 %v653
    %790 = vmatmul.f32.gmra.mxu0 %v772
    %v791 = vpop.f32.mrf.mxu0
    %v792 = vadd.f32 0.0, %v791
    %793 = vdwg.mxu0
    %v794 = vadd.f32 %v646, %v769
    %v795 = vadd.f32 %v647, %v792
    %v796 = vld [vmem:[#allocation5 + $0x60] sm:$0xff]
    %v797 = vld [vmem:[#allocation5 + $0x68] sm:$0xff]
    %v798 = vld [vmem:[#allocation5 + $0x70] sm:$0xff]
    %v799 = vld [vmem:[#allocation5 + $0x78] sm:$0xff]
    %v800 = vld [vmem:[#allocation5 + $0x127] sm:$0x1]
    %v801 = vperm.slane %v800, 0
    %v803 = vsel %vm48, %v794, 0
    %v806 = vsel %vm48, %v795, 0
    %808 = vmatpush.msra.mxu0 0.0
    %809 = vmatpush.msra.mxu0 0.0
    %810 = vmatpush.msra.mxu0 0.0
    %811 = vmatpush.msra.mxu0 0.0
    %812 = vmatpush.msra.mxu0 0.0
    %813 = vmatpush.msra.mxu0 0.0
    %814 = vmatpush.msra.mxu0 0.0
    %815 = vmatpush.msra.mxu0 0.0
    %816 = vmatpush.msra.mxu0 0.0
    %817 = vmatpush.msra.mxu0 0.0
    %818 = vmatpush.msra.mxu0 0.0
    %819 = vmatpush.msra.mxu0 0.0
    %820 = vmatpush.msra.mxu0 %v799
    %821 = vmatpush.msra.mxu0 %v798
    %822 = vmatpush.msra.mxu0 %v797
    %823 = vmatpush.msra.mxu0 %v796
    %824 = vmatmul.f32.gmra.mxu0 %v803
    %v825 = vpop.f32.mrf.mxu0
    %v826 = vadd.f32 %v801, %v825
    %827 = vmatmul.f32.gmra.mxu0 %v806
    %v828 = vpop.f32.mrf.mxu0
    %v829 = vadd.f32 %v801, %v828
    %830 = vdwg.mxu0
    %v831 = vadd.f32 %v44, %v826
    %v832 = vadd.f32 %v45, %v829
    %v833 = vld [vmem:[#allocation5 + $0x122] sm:$0x1]
    %v834 = vld [vmem:[#allocation5 + $0x123] sm:$0x1]
    %v835 = vsel %vm48, %v831, 0.0
    %836 = vadd.xlane.f32.xlu0 %v835
    %v837 = vpop.xlane.xlu0 %836
    %v838 = vsel %vm48, %v832, 0.0
    %839 = vadd.xlane.f32.xlu0 %v838
    %v840 = vpop.xlane.xlu0 %839
    %v841 = vmul.f32 %v837, %v61
    %v842 = vmul.f32 %v840, %v61
    %v843 = vsub.f32 %v831, %v841
    %v844 = vsub.f32 %v832, %v842
    %v845 = vmul.f32 %v843, %v843
    %v846 = vmul.f32 %v844, %v844
    %v847 = vsel %vm48, %v845, 0.0
    %848 = vadd.xlane.f32.xlu0 %v847
    %v849 = vpop.xlane.xlu0 %848
    %v850 = vsel %vm48, %v846, 0.0
    %851 = vadd.xlane.f32.xlu0 %v850
    %v852 = vpop.xlane.xlu0 %851
    %v853 = vmul.f32 %v849, %v61
    %v854 = vmul.f32 %v852, %v61
    %v855 = vadd.f32 %v853, 1e-05
    %v856 = vadd.f32 %v854, 1e-05
    %v857 = vrsqrt.pop %v855
    %v858 = vmul.f32 %v857, %v855
    %v859 = vmul.f32 %v858, %v857
    %v860 = vmul.f32 0.5, %v859
    %v861 = vsub.f32 1.5, %v860
    %v862 = vmul.f32 %v857, %v861
    %vm863 = vweird.f32 %v855
    %vm864 = vweird.f32 %v857
    %vm865 = vmor %vm863, %vm864
    %v866 = vsel %vm865, %v857, %v862
    %v867 = vrsqrt.pop %v856
    %v868 = vmul.f32 %v867, %v856
    %v869 = vmul.f32 %v868, %v867
    %v870 = vmul.f32 0.5, %v869
    %v871 = vsub.f32 1.5, %v870
    %v872 = vmul.f32 %v867, %v871
    %vm873 = vweird.f32 %v856
    %vm874 = vweird.f32 %v867
    %vm875 = vmor %vm873, %vm874
    %v876 = vsel %vm875, %v867, %v872
    %v877 = vmul.f32 %v843, %v866
    %v878 = vmul.f32 %v844, %v876
    %v879 = vperm.slane %v833, 0
    %v880 = vmul.f32 %v877, %v879
    %v881 = vmul.f32 %v878, %v879
    %v882 = vperm.slane %v834, 0
    %v883 = vadd.f32 %v880, %v882
    %v884 = vadd.f32 %v881, %v882
    %v885 = vld [vmem:[#allocation5 + $0x80] sm:$0xff]
    %v886 = vld [vmem:[#allocation5 + $0x88] sm:$0xff]
    %v887 = vld [vmem:[#allocation5 + $0x90] sm:$0xff]
    %v888 = vld [vmem:[#allocation5 + $0x98] sm:$0xff]
    %v889 = vld [vmem:[#allocation5 + $0x128] sm:$0x1]
    %v890 = vperm.slane %v889, 0
    %v892 = vsel %vm48, %v883, 0
    %v895 = vsel %vm48, %v884, 0
    %897 = vmatpush.msra.mxu0 0.0
    %898 = vmatpush.msra.mxu0 0.0
    %899 = vmatpush.msra.mxu0 0.0
    %900 = vmatpush.msra.mxu0 0.0
    %901 = vmatpush.msra.mxu0 0.0
    %902 = vmatpush.msra.mxu0 0.0
    %903 = vmatpush.msra.mxu0 0.0
    %904 = vmatpush.msra.mxu0 0.0
    %905 = vmatpush.msra.mxu0 0.0
    %906 = vmatpush.msra.mxu0 0.0
    %907 = vmatpush.msra.mxu0 0.0
    %908 = vmatpush.msra.mxu0 0.0
    %909 = vmatpush.msra.mxu0 %v888
    %910 = vmatpush.msra.mxu0 %v887
    %911 = vmatpush.msra.mxu0 %v886
    %912 = vmatpush.msra.mxu0 %v885
    %913 = vmatmul.f32.gmra.mxu0 %v892
    %v914 = vpop.f32.mrf.mxu0
    %v915 = vadd.f32 %v890, %v914
    %916 = vmatmul.f32.gmra.mxu0 %v895
    %v917 = vpop.f32.mrf.mxu0
    %v918 = vadd.f32 %v890, %v917
    %919 = vdwg.mxu0
    %v920 = vmul.f32 %v915, 0.5
    %v921 = vmul.f32 %v918, 0.5
    %v922 = vmul.f32 %v915, 0.70710677
    %v923 = vmul.f32 %v918, 0.70710677
    %v924 = vand.u32 2147483647, %v922
    %v925 = vand.u32 2147483647, %v923
    %v926 = vmul.f32 %v924, 0.3275911
    %v927 = vmul.f32 %v925, 0.3275911
    %v928 = vadd.f32 %v926, 1.0
    %v929 = vadd.f32 %v927, 1.0
    %v930 = vrcp.pop %v928
    %v931 = vmul.f32 %v928, %v930
    %v932 = vsub.f32 1.0, %v931
    %v933 = vmul.f32 %v930, %v932
    %v934 = vadd.f32 %v930, %v933
    %vm935 = vweird.f32 %v928
    %vm936 = vweird.f32 %v930
    %vm937 = vmor %vm935, %vm936
    %v938 = vsel %vm937, %v930, %v934
    %v939 = vand.u32 2147483647, %v928
    %vm940 = vcmp.eq.f32.partialorder %v939, 8.507059e+37
    %v941 = vand.u32 %v928, 2147483648
    %v942 = vor.u32 1.1754944e-38, %v941
    %v943 = vsel %vm940, %v942, %v938
    %v944 = vmul.f32 1.0, %v943
    %v945 = vrcp.pop %v929
    %v946 = vmul.f32 %v929, %v945
    %v947 = vsub.f32 1.0, %v946
    %v948 = vmul.f32 %v945, %v947
    %v949 = vadd.f32 %v945, %v948
    %vm950 = vweird.f32 %v929
    %vm951 = vweird.f32 %v945
    %vm952 = vmor %vm950, %vm951
    %v953 = vsel %vm952, %v945, %v949
    %v954 = vand.u32 2147483647, %v929
    %vm955 = vcmp.eq.f32.partialorder %v954, 8.507059e+37
    %v956 = vand.u32 %v929, 2147483648
    %v957 = vor.u32 1.1754944e-38, %v956
    %v958 = vsel %vm955, %v957, %v953
    %v959 = vmul.f32 1.0, %v958
    %v960 = vmul.f32 %v944, 1.0614054
    %v961 = vmul.f32 %v959, 1.0614054
    %v962 = vadd.f32 %v960, -1.4531521
    %v963 = vadd.f32 %v961, -1.4531521
    %v964 = vmul.f32 %v944, %v962
    %v965 = vmul.f32 %v959, %v963
    %v966 = vadd.f32 %v964, 1.4214138
    %v967 = vadd.f32 %v965, 1.4214138
    %v968 = vmul.f32 %v944, %v966
    %v969 = vmul.f32 %v959, %v967
    %v970 = vadd.f32 %v968, -0.28449672
    %v971 = vadd.f32 %v969, -0.28449672
    %v972 = vmul.f32 %v944, %v970
    %v973 = vmul.f32 %v959, %v971
    %v974 = vadd.f32 %v972, 0.2548296
    %v975 = vadd.f32 %v973, 0.2548296
    %v976 = vmul.f32 %v944, %v974
    %v977 = vmul.f32 %v959, %v975
    %v978 = vmul.f32 %v924, %v924
    %v979 = vmul.f32 %v925, %v925
    %v980 = vsub.f32 0.0, %v978
    %v981 = vsub.f32 0.0, %v979
    %v982 = vmul.f32 %v980, 1.442695
    %v983 = vpow.pop %v982
    %v984 = vmul.f32 %v981, 1.442695
    %v985 = vpow.pop %v984
    %v986 = vmul.f32 %v976, %v983
    %v987 = vmul.f32 %v977, %v985
    %v988 = vsub.f32 1.0, %v986
    %v989 = vsub.f32 1.0, %v987
    %vm990 = vcmp.lt.f32.partialorder %v922, 0.0
    %vm991 = vcmp.lt.f32.partialorder %v923, 0.0
    %v992 = vsub.f32 0.0, %v988
    %v993 = vsub.f32 0.0, %v989
    %v994 = vsel %vm990, %v992, %v988
    %v995 = vsel %vm991, %v993, %v989
    %v996 = vadd.f32 %v994, 1.0
    %v997 = vadd.f32 %v995, 1.0
    %v998 = vmul.f32 %v920, %v996
    %v999 = vmul.f32 %v921, %v997
    %v1000 = vld [vmem:[#allocation5 + $0xa0] sm:$0xff]
    %v1001 = vld [vmem:[#allocation5 + $0xa8] sm:$0xff]
    %v1002 = vld [vmem:[#allocation5 + $0xb0] sm:$0xff]
    %v1003 = vld [vmem:[#allocation5 + $0xb8] sm:$0xff]
    %v1004 = vld [vmem:[#allocation5 + $0xc0] sm:$0xff]
    %v1005 = vld [vmem:[#allocation5 + $0xc8] sm:$0xff]
    %v1006 = vld [vmem:[#allocation5 + $0xd0] sm:$0xff]
    %v1007 = vld [vmem:[#allocation5 + $0xd8] sm:$0xff]
    %v1008 = vld [vmem:[#allocation5 + $0xe0] sm:$0xff]
    %v1009 = vld [vmem:[#allocation5 + $0xe8] sm:$0xff]
    %v1010 = vld [vmem:[#allocation5 + $0xf0] sm:$0xff]
    %v1011 = vld [vmem:[#allocation5 + $0xf8] sm:$0xff]
    %v1012 = vld [vmem:[#allocation5 + $0x100] sm:$0xff]
    %v1013 = vld [vmem:[#allocation5 + $0x108] sm:$0xff]
    %v1014 = vld [vmem:[#allocation5 + $0x110] sm:$0xff]
    %v1015 = vld [vmem:[#allocation5 + $0x118] sm:$0xff]
    %v1016 = vld [vmem:[#allocation5 + $0x129] sm:$0x1]
    %v1017 = vperm.slane %v1016, 0
    %1018 = vmatpush.msra.mxu0 %v1015
    %1019 = vmatpush.msra.mxu0 %v1014
    %1020 = vmatpush.msra.mxu0 %v1013
    %1021 = vmatpush.msra.mxu0 %v1012
    %1022 = vmatpush.msra.mxu0 %v1011
    %1023 = vmatpush.msra.mxu0 %v1010
    %1024 = vmatpush.msra.mxu0 %v1009
    %1025 = vmatpush.msra.mxu0 %v1008
    %1026 = vmatpush.msra.mxu0 %v1007
    %1027 = vmatpush.msra.mxu0 %v1006
    %1028 = vmatpush.msra.mxu0 %v1005
    %1029 = vmatpush.msra.mxu0 %v1004
    %1030 = vmatpush.msra.mxu0 %v1003
    %1031 = vmatpush.msra.mxu0 %v1002
    %1032 = vmatpush.msra.mxu0 %v1001
    %1033 = vmatpush.msra.mxu0 %v1000
    %1034 = vmatmul.f32.gmra.mxu0 %v998
    %v1035 = vpop.f32.mrf.mxu0
    %v1036 = vadd.f32 %v1017, %v1035
    %1037 = vmatmul.f32.gmra.mxu0 %v999
    %v1038 = vpop.f32.mrf.mxu0
    %v1039 = vadd.f32 %v1017, %v1038
    %1040 = vdwg.mxu0
    %v1041 = vadd.f32 %v831, %v1036
    %v1042 = vadd.f32 %v832, %v1039
    %1043 = vst.msk [vmem:[#allocation7] sm:$0xff] %vm48, %v1041
    %1044 = vst.msk [vmem:[#allocation7 + $0x8] sm:$0xff] %vm48, %v1042
    // Predicated region
    $region18: #{tpu_custom_call.1} parent=1 // pred_check
      _
    $region19: #{tpu_custom_call.1} parent=1 // pred_check_branch
      %1046 = sbr.rel (0) target = $region21
    $region20: #{tpu_custom_call.1} parent=1 // pred_region
      %1048 = vsyncadd [#allocation4], 0
      %s1049 = sshll.u32 [#allocation7], 4
      %s1050 = int_to_ptr.vmem [resolvable:$true] %s1049
      %s1051 = sshll.u32 %s2, 4
      %s1052 = int_to_ptr.hbm [resolvable:$true] %s1051
      %1057 = dma.vmem_to_hbm [thread:$0]  %s1050, 256, %s1052, [#allocation4], 128, 128, 8
    $region21: #{tpu_custom_call.1} parent=1 // pred_fallthru
      _
    // Predicated region
    $region22: #{tpu_custom_call.1} parent=1 // pred_check
      _
    $region23: #{tpu_custom_call.1} parent=1 // pred_check_branch
      %1059 = sbr.rel (0) target = $region25
    $region24: #{tpu_custom_call.1} parent=1 // pred_region
      %1061 = dma.done [#allocation4], 256
    $region25: #{tpu_custom_call.1} parent=1 // pred_fallthru
      _
    %1062 = vsyncpa [#allocation3], 1
    %1063 = vsyncpa [#allocation6], 1
    %1064 = vsyncpa [#allocation4], 1

</llo_original>
